<compile_context>
chip_gen: v7x
topology: tpu7x:2x2x1
jax: 0.10.0
libtpu: 0.0.40
codegen_flags: <defaults>
</compile_context>

<pallas_src>
import math

import jax
import jax.numpy as jnp
from jax.experimental import pallas as pl
from jax.experimental.pallas import tpu as pltpu

_GROUPS = ["c", "t", "b", "r", "l", "tr", "tl", "br", "bl"]
_INV_SQRT2 = 1.0 / math.sqrt(2.0)
_BN_EPS = 1e-5


def _shift_offsets(step):
    # out[h, w] = y[h + dh, w + dw] (zero when the source is out of bounds), in concat
    # group order. Derived from the exact pad/narrow sequence of the PyTorch forward.
    return [
        (0, 0),             # c
        (0, 0),             # t   (pad bottom then keep top H rows -> identity)
        (1 - step, 0),      # b
        (0, -step),         # r
        (0, 1),             # l
        (1, -step),         # tr
        (1, 1),             # tl
        (-step, -step),     # br
        (-step, 1),         # bl
    ]


def _gelu_exact(x):
    # Exact-erf GELU with erf evaluated via Abramowitz & Stegun 7.1.26 (|err| < 1.5e-7):
    # only uses abs/exp/div/mul/add/where, all of which lower cleanly in Mosaic.
    z = x * _INV_SQRT2
    az = jnp.abs(z)
    t = 1.0 / (1.0 + 0.3275911 * az)
    poly = ((((1.061405429 * t - 1.453152027) * t + 1.421413741) * t
             - 0.284496736) * t + 0.254829592) * t
    erf_abs = 1.0 - poly * jnp.exp(-az * az)
    erf = jnp.where(z >= 0.0, erf_abs, -erf_abs)
    return 0.5 * x * (1.0 + erf)


def _gelu_tanh(x):
    # tanh-approximate GELU: the transcendental runs on the otherwise-idle EUP slot.
    c = math.sqrt(2.0 / math.pi)
    return 0.5 * x * (1.0 + jnp.tanh(c * (x + 0.044715 * (x * x * x))))


def _make_kernel(W, step, TN, Cgp, approx_gelu, mm_dtype):
    offsets = _shift_offsets(step)

    def kernel(x_ref, masks_ref, scale_ref, bias_ref, w9_ref, b9_ref,
               wf_ref, bf_ref, o_ref):
        # ---- BN (inference, folded) + GELU ------------------------------------------
        x = x_ref[...]                                        # (C, TN) f32, lane-dense
        xn = x * scale_ref[...] + bias_ref[...]               # (C,1) broadcasts on lanes
        act = _gelu_tanh(xn) if approx_gelu else _gelu_exact(xn)

        # ---- nine 1x1 convs fused into ONE MXU matmul: (C_pad, C) @ (C, TN) ---------
        # Group k occupies rows [k*Cgp, (k+1)*Cgp); rows past Cg are zero weight/bias.
        y = jnp.dot(w9_ref[...], act.astype(mm_dtype),
                    preferred_element_type=jnp.float32)
        y = y + b9_ref[...]                                   # (C_pad, TN) f32

        # ---- shifted-pillars gather: per-group, tile-aligned row blocks -------------
        # Per group: XLU lane-roll of only that group's (Cgp, TN) rows by the source
        # offset, then one multiply by the precomputed in-image boundary mask. Rolls wrap
        # across image boundaries only at lanes the mask zeroes anyway.
        pieces = []
        for k, (dh, dw) in enumerate(offsets):
            yk = y[k * Cgp:(k + 1) * Cgp, :]                  # aligned sublane-tile slice
            sh = (-(dh * W + dw)) % TN                        # out[p] = y[p + dh*W + dw]
            rolled = pltpu.roll(yk, shift=sh, axis=1) if sh else yk
            if (dh, dw) != (0, 0):
                rolled = rolled * masks_ref[k:k + 1, :]       # (1, TN) boundary mask
            pieces.append(rolled)
        z = jnp.concatenate(pieces, axis=0)                   # (C_pad, TN), tile-aligned

        # ---- cs_fuse 1x1 conv: (C, C_pad) @ (C_pad, TN) + bias, lane-dense store ----
        out = jnp.dot(wf_ref[...], z.astype(mm_dtype),
                      preferred_element_type=jnp.float32)
        o_ref[...] = (out + bf_ref[...]).astype(o_ref.dtype)

    return kernel


def _vmem_budget_bytes():
    """Generation-aware usable-VMEM budget (~48 MiB on v7x, ~96 MiB on v5e/v6e)."""
    cap = 64 * 1024 * 1024                      # conservative fallback (v7x-sized)
    try:
        info = pltpu.get_tpu_info()
        cap = int(getattr(info, "vmem_capacity_bytes", cap))
    except Exception:
        pass
    return max(32 * 1024 * 1024, (cap * 3) // 4)


def _choose_images_per_block(batch, hw, c, c_pad, vmem_budget, target_lanes=8192):
    """Whole images per grid step (lane tile = imgs * H * W).

    Preference order: (1) at least 2 grid steps (keeps both v7x TensorCores busy and
    lets the pipeline overlap DMA with compute), (2) largest 128-aligned lane tile not
    exceeding `target_lanes`, subject to a VMEM-budget estimate of the live (C, TN) /
    (C_pad, TN) f32 intermediates plus double-buffered I/O blocks.
    """
    bytes_per_lane = 4 * (6 * c + 3 * c_pad)
    candidates = []
    for d in range(1, batch + 1):
        if batch % d:
            continue
        lanes = d * hw
        if d != batch and lanes % 128:
            continue                              # lane dim must be 128-mult or full
        candidates.append((d, lanes))
    fitting = [(d, l) for d, l in candidates if bytes_per_lane * l <= vmem_budget]
    pool = fitting if fitting else [min(candidates, key=lambda t: t[1])]

    def score(t):
        d, lanes = t
        nblk = batch // d
        return (nblk >= 2, lanes <= target_lanes,
                lanes if lanes <= target_lanes else -lanes)

    return max(pool, key=score)[0]


def shifted_pillars_forward(x_nchw, params, step, *, fast_math=True):
    B, C, H, W = x_nchw.shape
    assert C % 9 == 0, "channels must be divisible by 9 (as implied by cs_fuse)"
    Cg = C // 9
    Cgp = ((Cg + 7) // 8) * 8        # per-group rows padded to a sublane tile multiple
    C_pad = 9 * Cgp
    HW = H * W
    mm_dtype = jnp.bfloat16 if fast_math else jnp.float32

    # Fold BN (eval mode) into per-channel scale/bias, shaped (C, 1) for this layout.
    scale1d = params["bn_gamma"] / jnp.sqrt(params["bn_var"] + _BN_EPS)
    bias1d = params["bn_beta"] - params["bn_mean"] * scale1d
    scale = scale1d.reshape(C, 1).astype(jnp.float32)
    bias = bias1d.reshape(C, 1).astype(jnp.float32)

    # Nine 1x1-conv weights stacked row-wise (concat order), each group zero-padded to
    # Cgp rows so the kernel's per-group slices are sublane-tile aligned.
    def pad_rows(w):                                   # (Cg, C) -> (Cgp, C)
        return jnp.pad(w, ((0, Cgp - Cg), (0, 0)))

    w9 = jnp.concatenate([pad_rows(params[f"w_{g}"]) for g in _GROUPS], axis=0)
    b9 = jnp.concatenate(
        [jnp.pad(params[f"b_{g}"], (0, Cgp - Cg)) for g in _GROUPS]).reshape(C_pad, 1)
    wf_groups = jnp.split(params["w_fuse"], 9, axis=1)           # (C, Cg) each
    wf = jnp.concatenate(
        [jnp.pad(wg, ((0, 0), (0, Cgp - Cg))) for wg in wf_groups], axis=1)  # (C, C_pad)
    bf = params["b_fuse"].reshape(C, 1).astype(jnp.float32)

    w9 = w9.astype(mm_dtype)
    wf = wf.astype(mm_dtype)
    b9 = b9.astype(jnp.float32)

    vmem_budget = _vmem_budget_bytes()
    imgs = _choose_images_per_block(B, HW, C, C_pad, vmem_budget)
    nblk = B // imgs
    TN = imgs * HW

    # NCHW -> (C, B*H*W): channels on sublanes, flattened pixels on lanes (lane-dense).
    x = jnp.transpose(x_nchw, (1, 0, 2, 3)).reshape(C, B * HW).astype(jnp.float32)

    # Precompute the per-group in-image boundary masks once (same for every grid step).
    hw_idx = jnp.arange(HW, dtype=jnp.int32)
    hh = hw_idx // W
    ww = hw_idx % W
    mask_rows = []
    for dh, dw in _shift_offsets(step):
        m = (hh >= -dh) & (hh < H - dh) & (ww >= -dw) & (ww < W - dw)
        mask_rows.append(m)
    masks = jnp.stack(mask_rows).astype(jnp.float32)             # (9, HW)
    masks = jnp.tile(masks, (1, imgs))                           # (9, TN)

    kernel = _make_kernel(W, step, TN, Cgp, fast_math, mm_dtype)

    def const(shape):
        return pl.BlockSpec(shape, lambda i: (0, 0))

    out = pl.pallas_call(
        kernel,
        out_shape=jax.ShapeDtypeStruct((C, B * HW), jnp.float32),
        grid=(nblk,),
        in_specs=[
            pl.BlockSpec((C, TN), lambda i: (0, i)),   # x: lane tile of whole images
            const((9, TN)),       # per-group boundary masks
            const((C, 1)),        # bn scale
            const((C, 1)),        # bn bias
            const((C_pad, C)),    # fused (padded) 9x conv weights
            const((C_pad, 1)),    # fused (padded) 9x conv biases
            const((C, C_pad)),    # cs_fuse weight (columns padded per group)
            const((C, 1)),        # cs_fuse bias
        ],
        out_specs=pl.BlockSpec((C, TN), lambda i: (0, i)),
        compiler_params=pltpu.CompilerParams(
            dimension_semantics=("parallel",),
            vmem_limit_bytes=vmem_budget,
        ),
    )(x, masks, scale, bias, w9, b9, wf, bf)

    return jnp.transpose(out.reshape(C, B, H, W), (1, 0, 2, 3))


def init_params(key, C):
    """Deterministic synthetic parameters matching the module's shapes."""
    Cg = C // 9
    keys = jax.random.split(key, 4 + 2 * len(_GROUPS) + 2)
    it = iter(keys)
    p = {
        "bn_gamma": 1.0 + 0.1 * jax.random.normal(next(it), (C,), jnp.float32),
        "bn_beta": 0.1 * jax.random.normal(next(it), (C,), jnp.float32),
        "bn_mean": 0.1 * jax.random.normal(next(it), (C,), jnp.float32),
        "bn_var": 0.5 + jax.random.uniform(next(it), (C,), jnp.float32),
    }
    for g in _GROUPS:
        p[f"w_{g}"] = 0.2 * jax.random.normal(next(it), (Cg, C), jnp.float32)
        p[f"b_{g}"] = 0.05 * jax.random.normal(next(it), (Cg,), jnp.float32)
    p["w_fuse"] = 0.2 * jax.random.normal(next(it), (C, C), jnp.float32)
    p["b_fuse"] = 0.05 * jax.random.normal(next(it), (C,), jnp.float32)
    return p


def reference_forward(x, p, step):
    """Pure-JAX reference following the PyTorch ops literally (NCHW, f32, exact erf)."""
    B, C, H, W = x.shape
    xn = (x - p["bn_mean"][None, :, None, None]) / jnp.sqrt(
        p["bn_var"][None, :, None, None] + _BN_EPS)
    xn = xn * p["bn_gamma"][None, :, None, None] + p["bn_beta"][None, :, None, None]
    a = 0.5 * xn * (1.0 + jax.lax.erf(xn * _INV_SQRT2))

    def conv1x1(t, w, b):
        return jnp.einsum("bchw,oc->bohw", t, w) + b[None, :, None, None]

    ys = {g: conv1x1(a, p[f"w_{g}"], p[f"b_{g}"]) for g in _GROUPS}
    s = step

    def padhw(t, wl, wr, ht, hb):
        return jnp.pad(t, ((0, 0), (0, 0), (ht, hb), (wl, wr)))

    x_t = padhw(ys["t"], 0, 0, 0, s)[:, :, 0:H, :]
    x_b = padhw(ys["b"], 0, 0, s, 0)[:, :, 1:1 + H, :]
    x_l = padhw(ys["l"], 0, s, 0, 0)[:, :, :, 1:1 + W]
    x_r = padhw(ys["r"], s, 0, 0, 0)[:, :, :, 0:W]
    x_tl = padhw(ys["tl"], 0, 0, 0, s)[:, :, 1:1 + H, :]
    x_tl = padhw(x_tl, 0, s, 0, 0)[:, :, :, 1:1 + W]
    x_tr = padhw(ys["tr"], 0, 0, 0, s)[:, :, 1:1 + H, :]
    x_tr = padhw(x_tr, s, 0, 0, 0)[:, :, :, 0:W]
    x_bl = padhw(ys["bl"], 0, 0, s, 0)[:, :, 0:H, :]
    x_bl = padhw(x_bl, 0, s, 0, 0)[:, :, :, 1:1 + W]
    x_br = padhw(ys["br"], 0, 0, s, 0)[:, :, 0:H, :]
    x_br = padhw(x_br, s, 0, 0, 0)[:, :, :, 0:W]

    cat = jnp.concatenate(
        [ys["c"], x_t, x_b, x_r, x_l, x_tr, x_tl, x_br, x_bl], axis=1)
    return jnp.einsum("bchw,oc->bohw", cat, p["w_fuse"]) + p["b_fuse"][None, :, None, None]


if __name__ == "__main__":
    B, C, H, W = 2, 36, 16, 16
    key = jax.random.PRNGKey(0)
    kx, kp = jax.random.split(key)
    x = jax.random.normal(kx, (B, C, H, W), jnp.float32)
    params = init_params(kp, C)

    for step in (1, 2):
        ref = reference_forward(x, params, step)

        # Exact path (f32 MXU operands, exact-erf GELU): strict semantic check.
        out = jax.block_until_ready(
            shifted_pillars_forward(x, params, step, fast_math=False))
        assert out.shape == (B, C, H, W)
        err = float(jnp.max(jnp.abs(out - ref)))
        assert jnp.allclose(out, ref, atol=2e-3, rtol=2e-3), (
            f"exact path step={step} max abs err {err}")

        # Fast path (default: bf16 MXU operands w/ f32 accumulation, tanh GELU):
        # looser tolerance purely reflects bf16 operand rounding — the semantics are
        # pinned by the strict f32 check above.
        out_f = jax.block_until_ready(
            shifted_pillars_forward(x, params, step, fast_math=True))
        err_f = float(jnp.max(jnp.abs(out_f - ref)))
        assert jnp.allclose(out_f, ref, atol=1e-1, rtol=1e-1), (
            f"fast path step={step} max abs err {err_f}")

    print("KERNEL_OK")
</pallas_src>

<mosaic_0001>
module attributes {stable_mosaic.version = 11 : i64} {
  func.func @kernel(%arg0: i32, %arg1: memref<36x256xf32, #tpu.memory_space<vmem>>, %arg2: memref<9x256xf32, #tpu.memory_space<vmem>>, %arg3: memref<36x1xf32, #tpu.memory_space<vmem>>, %arg4: memref<36x1xf32, #tpu.memory_space<vmem>>, %arg5: memref<72x36xf32, #tpu.memory_space<vmem>>, %arg6: memref<72x1xf32, #tpu.memory_space<vmem>>, %arg7: memref<36x72xf32, #tpu.memory_space<vmem>>, %arg8: memref<36x1xf32, #tpu.memory_space<vmem>>, %arg9: memref<36x256xf32, #tpu.memory_space<vmem>>) attributes {dimension_semantics = [#tpu.dimension_semantics<parallel>], iteration_bounds = array<i64: 2>, scalar_prefetch = 0 : i64, scratch_operands = 0 : i64, tpu.core_type = #tpu.core_type<tc>, window_params = [{transform_indices = @transform_0, window_bounds = array<i64: 36, 256>}, {pipeline_mode = #tpu.pipeline_mode<synchronous>, transform_indices = @transform_1, window_bounds = array<i64: 9, 256>}, {pipeline_mode = #tpu.pipeline_mode<synchronous>, transform_indices = @transform_2, window_bounds = array<i64: 36, 1>}, {pipeline_mode = #tpu.pipeline_mode<synchronous>, transform_indices = @transform_3, window_bounds = array<i64: 36, 1>}, {pipeline_mode = #tpu.pipeline_mode<synchronous>, transform_indices = @transform_4, window_bounds = array<i64: 72, 36>}, {pipeline_mode = #tpu.pipeline_mode<synchronous>, transform_indices = @transform_5, window_bounds = array<i64: 72, 1>}, {pipeline_mode = #tpu.pipeline_mode<synchronous>, transform_indices = @transform_6, window_bounds = array<i64: 36, 72>}, {pipeline_mode = #tpu.pipeline_mode<synchronous>, transform_indices = @transform_7, window_bounds = array<i64: 36, 1>}, {transform_indices = @transform_8, window_bounds = array<i64: 36, 256>}]} {
    %c0 = arith.constant 0 : index
    %c0_0 = arith.constant 0 : index
    %0 = vector.load %arg1[%c0, %c0_0] : memref<36x256xf32, #tpu.memory_space<vmem>>, vector<36x256xf32>
    %c0_1 = arith.constant 0 : index
    %c0_2 = arith.constant 0 : index
    %1 = vector.load %arg3[%c0_1, %c0_2] : memref<36x1xf32, #tpu.memory_space<vmem>>, vector<36x1xf32>
    %2 = vector.broadcast %1 : vector<36x1xf32> to vector<36x256xf32>
    %3 = arith.mulf %0, %2 : vector<36x256xf32>
    %c0_3 = arith.constant 0 : index
    %c0_4 = arith.constant 0 : index
    %4 = vector.load %arg4[%c0_3, %c0_4] : memref<36x1xf32, #tpu.memory_space<vmem>>, vector<36x1xf32>
    %5 = vector.broadcast %4 : vector<36x1xf32> to vector<36x256xf32>
    %6 = arith.addf %3, %5 : vector<36x256xf32>
    %cst = arith.constant 0.707106769 : f32
    %7 = vector.broadcast %cst : f32 to vector<36x256xf32>
    %8 = arith.mulf %6, %7 : vector<36x256xf32>
    %9 = math.absf %8 : vector<36x256xf32>
    %cst_5 = arith.constant 0.327591091 : f32
    %10 = vector.broadcast %cst_5 : f32 to vector<36x256xf32>
    %11 = arith.mulf %10, %9 : vector<36x256xf32>
    %cst_6 = arith.constant 1.000000e+00 : f32
    %12 = vector.broadcast %cst_6 : f32 to vector<36x256xf32>
    %13 = arith.addf %12, %11 : vector<36x256xf32>
    %cst_7 = arith.constant 1.000000e+00 : f32
    %14 = vector.broadcast %cst_7 : f32 to vector<36x256xf32>
    %15 = arith.divf %14, %13 : vector<36x256xf32>
    %cst_8 = arith.constant 1.06140542 : f32
    %16 = vector.broadcast %cst_8 : f32 to vector<36x256xf32>
    %17 = arith.mulf %16, %15 : vector<36x256xf32>
    %cst_9 = arith.constant 1.45315206 : f32
    %18 = vector.broadcast %cst_9 : f32 to vector<36x256xf32>
    %19 = arith.subf %17, %18 : vector<36x256xf32>
    %20 = arith.mulf %19, %15 : vector<36x256xf32>
    %cst_10 = arith.constant 1.42141378 : f32
    %21 = vector.broadcast %cst_10 : f32 to vector<36x256xf32>
    %22 = arith.addf %20, %21 : vector<36x256xf32>
    %23 = arith.mulf %22, %15 : vector<36x256xf32>
    %cst_11 = arith.constant 0.284496725 : f32
    %24 = vector.broadcast %cst_11 : f32 to vector<36x256xf32>
    %25 = arith.subf %23, %24 : vector<36x256xf32>
    %26 = arith.mulf %25, %15 : vector<36x256xf32>
    %cst_12 = arith.constant 0.254829586 : f32
    %27 = vector.broadcast %cst_12 : f32 to vector<36x256xf32>
    %28 = arith.addf %26, %27 : vector<36x256xf32>
    %29 = arith.mulf %28, %15 : vector<36x256xf32>
    %cst_13 = arith.constant 0.000000e+00 : f32
    %30 = vector.broadcast %cst_13 : f32 to vector<36x256xf32>
    %31 = arith.subf %30, %9 : vector<36x256xf32>
    %32 = arith.mulf %31, %9 : vector<36x256xf32>
    %33 = math.exp %32 : vector<36x256xf32>
    %34 = arith.mulf %29, %33 : vector<36x256xf32>
    %cst_14 = arith.constant 1.000000e+00 : f32
    %35 = vector.broadcast %cst_14 : f32 to vector<36x256xf32>
    %36 = arith.subf %35, %34 : vector<36x256xf32>
    %cst_15 = arith.constant 0.000000e+00 : f32
    %37 = vector.broadcast %cst_15 : f32 to vector<36x256xf32>
    %38 = arith.cmpf oge, %8, %37 : vector<36x256xf32>
    %cst_16 = arith.constant 0.000000e+00 : f32
    %39 = vector.broadcast %cst_16 : f32 to vector<36x256xf32>
    %40 = arith.subf %39, %36 : vector<36x256xf32>
    %41 = arith.select %38, %36, %40 : vector<36x256xi1>, vector<36x256xf32>
    %cst_17 = arith.constant 5.000000e-01 : f32
    %42 = vector.broadcast %cst_17 : f32 to vector<36x256xf32>
    %43 = arith.mulf %42, %6 : vector<36x256xf32>
    %cst_18 = arith.constant 1.000000e+00 : f32
    %44 = vector.broadcast %cst_18 : f32 to vector<36x256xf32>
    %45 = arith.addf %44, %41 : vector<36x256xf32>
    %46 = arith.mulf %43, %45 : vector<36x256xf32>
    %c0_19 = arith.constant 0 : index
    %c0_20 = arith.constant 0 : index
    %47 = vector.load %arg5[%c0_19, %c0_20] : memref<72x36xf32, #tpu.memory_space<vmem>>, vector<72x36xf32>
    %cst_21 = arith.constant dense<0.000000e+00> : vector<72x256xf32>
    %48 = tpu.matmul %47, %46, %cst_21 {dimension_numbers = #tpu.dot_dimension_numbers<[1], [0], [0], [1], [0, 0, 1, 1], [], []>} : vector<72x36xf32>, vector<36x256xf32>, vector<72x256xf32> -> vector<72x256xf32>
    %c0_22 = arith.constant 0 : index
    %c0_23 = arith.constant 0 : index
    %49 = vector.load %arg6[%c0_22, %c0_23] : memref<72x1xf32, #tpu.memory_space<vmem>>, vector<72x1xf32>
    %50 = vector.broadcast %49 : vector<72x1xf32> to vector<72x256xf32>
    %51 = arith.addf %48, %50 : vector<72x256xf32>
    %52 = vector.extract_strided_slice %51 {offsets = [0, 0], sizes = [8, 256], strides = [1, 1]} : vector<72x256xf32> to vector<8x256xf32>
    %53 = vector.extract_strided_slice %51 {offsets = [8, 0], sizes = [8, 256], strides = [1, 1]} : vector<72x256xf32> to vector<8x256xf32>
    %54 = vector.extract_strided_slice %51 {offsets = [16, 0], sizes = [8, 256], strides = [1, 1]} : vector<72x256xf32> to vector<8x256xf32>
    %55 = vector.extract_strided_slice %51 {offsets = [24, 0], sizes = [8, 256], strides = [1, 1]} : vector<72x256xf32> to vector<8x256xf32>
    %c1_i32 = arith.constant 1 : i32
    %56 = tpu.dynamic_rotate %55 by %c1_i32 dim 1 : vector<8x256xf32>, i32 -> vector<8x256xf32>
    %c3 = arith.constant 3 : index
    %c0_24 = arith.constant 0 : index
    %57 = vector.load %arg2[%c3, %c0_24] : memref<9x256xf32, #tpu.memory_space<vmem>>, vector<1x256xf32>
    %58 = vector.broadcast %57 : vector<1x256xf32> to vector<8x256xf32>
    %59 = arith.mulf %56, %58 : vector<8x256xf32>
    %60 = vector.extract_strided_slice %51 {offsets = [32, 0], sizes = [8, 256], strides = [1, 1]} : vector<72x256xf32> to vector<8x256xf32>
    %c255_i32 = arith.constant 255 : i32
    %61 = tpu.dynamic_rotate %60 by %c255_i32 dim 1 : vector<8x256xf32>, i32 -> vector<8x256xf32>
    %c4 = arith.constant 4 : index
    %c0_25 = arith.constant 0 : index
    %62 = vector.load %arg2[%c4, %c0_25] : memref<9x256xf32, #tpu.memory_space<vmem>>, vector<1x256xf32>
    %63 = vector.broadcast %62 : vector<1x256xf32> to vector<8x256xf32>
    %64 = arith.mulf %61, %63 : vector<8x256xf32>
    %65 = vector.extract_strided_slice %51 {offsets = [40, 0], sizes = [8, 256], strides = [1, 1]} : vector<72x256xf32> to vector<8x256xf32>
    %c241_i32 = arith.constant 241 : i32
    %66 = tpu.dynamic_rotate %65 by %c241_i32 dim 1 : vector<8x256xf32>, i32 -> vector<8x256xf32>
    %c5 = arith.constant 5 : index
    %c0_26 = arith.constant 0 : index
    %67 = vector.load %arg2[%c5, %c0_26] : memref<9x256xf32, #tpu.memory_space<vmem>>, vector<1x256xf32>
    %68 = vector.broadcast %67 : vector<1x256xf32> to vector<8x256xf32>
    %69 = arith.mulf %66, %68 : vector<8x256xf32>
    %70 = vector.extract_strided_slice %51 {offsets = [48, 0], sizes = [8, 256], strides = [1, 1]} : vector<72x256xf32> to vector<8x256xf32>
    %c239_i32 = arith.constant 239 : i32
    %71 = tpu.dynamic_rotate %70 by %c239_i32 dim 1 : vector<8x256xf32>, i32 -> vector<8x256xf32>
    %c6 = arith.constant 6 : index
    %c0_27 = arith.constant 0 : index
    %72 = vector.load %arg2[%c6, %c0_27] : memref<9x256xf32, #tpu.memory_space<vmem>>, vector<1x256xf32>
    %73 = vector.broadcast %72 : vector<1x256xf32> to vector<8x256xf32>
    %74 = arith.mulf %71, %73 : vector<8x256xf32>
    %75 = vector.extract_strided_slice %51 {offsets = [56, 0], sizes = [8, 256], strides = [1, 1]} : vector<72x256xf32> to vector<8x256xf32>
    %c17_i32 = arith.constant 17 : i32
    %76 = tpu.dynamic_rotate %75 by %c17_i32 dim 1 : vector<8x256xf32>, i32 -> vector<8x256xf32>
    %c7 = arith.constant 7 : index
    %c0_28 = arith.constant 0 : index
    %77 = vector.load %arg2[%c7, %c0_28] : memref<9x256xf32, #tpu.memory_space<vmem>>, vector<1x256xf32>
    %78 = vector.broadcast %77 : vector<1x256xf32> to vector<8x256xf32>
    %79 = arith.mulf %76, %78 : vector<8x256xf32>
    %80 = vector.extract_strided_slice %51 {offsets = [64, 0], sizes = [8, 256], strides = [1, 1]} : vector<72x256xf32> to vector<8x256xf32>
    %c15_i32 = arith.constant 15 : i32
    %81 = tpu.dynamic_rotate %80 by %c15_i32 dim 1 : vector<8x256xf32>, i32 -> vector<8x256xf32>
    %c8 = arith.constant 8 : index
    %c0_29 = arith.constant 0 : index
    %82 = vector.load %arg2[%c8, %c0_29] : memref<9x256xf32, #tpu.memory_space<vmem>>, vector<1x256xf32>
    %83 = vector.broadcast %82 : vector<1x256xf32> to vector<8x256xf32>
    %84 = arith.mulf %81, %83 : vector<8x256xf32>
    %85 = tpu.concatenate %52, %53, %54, %59, %64, %69, %74, %79, %84 in 0 : vector<8x256xf32>, vector<8x256xf32>, vector<8x256xf32>, vector<8x256xf32>, vector<8x256xf32>, vector<8x256xf32>, vector<8x256xf32>, vector<8x256xf32>, vector<8x256xf32> -> vector<72x256xf32>
    %c0_30 = arith.constant 0 : index
    %c0_31 = arith.constant 0 : index
    %86 = vector.load %arg7[%c0_30, %c0_31] : memref<36x72xf32, #tpu.memory_space<vmem>>, vector<36x72xf32>
    %cst_32 = arith.constant dense<0.000000e+00> : vector<36x256xf32>
    %87 = tpu.matmul %86, %85, %cst_32 {dimension_numbers = #tpu.dot_dimension_numbers<[1], [0], [0], [1], [0, 0, 1, 1], [], []>} : vector<36x72xf32>, vector<72x256xf32>, vector<36x256xf32> -> vector<36x256xf32>
    %c0_33 = arith.constant 0 : index
    %c0_34 = arith.constant 0 : index
    %88 = vector.load %arg8[%c0_33, %c0_34] : memref<36x1xf32, #tpu.memory_space<vmem>>, vector<36x1xf32>
    %89 = vector.broadcast %88 : vector<36x1xf32> to vector<36x256xf32>
    %90 = arith.addf %87, %89 : vector<36x256xf32>
    %c0_35 = arith.constant 0 : index
    %c0_36 = arith.constant 0 : index
    %91 = vector.load %arg9[%c0_35, %c0_36] : memref<36x256xf32, #tpu.memory_space<vmem>>, vector<36x256xf32>
    tpu.vector_store %arg9[%c0_35, %c0_36], %90 {strides = array<i32>} : memref<36x256xf32, #tpu.memory_space<vmem>>, vector<36x256xf32>,
    return
  }
  func.func @transform_0(%arg0: i32) -> (i32, i32) {
    %c0_i32 = arith.constant 0 : i32
    %c0_i32_0 = arith.constant 0 : i32
    return %c0_i32, %arg0 : i32, i32
  }
  func.func @transform_1(%arg0: i32) -> (i32, i32) {
    %c0_i32 = arith.constant 0 : i32
    %c0_i32_0 = arith.constant 0 : i32
    %c0_i32_1 = arith.constant 0 : i32
    return %c0_i32, %c0_i32_0 : i32, i32
  }
  func.func @transform_2(%arg0: i32) -> (i32, i32) {
    %c0_i32 = arith.constant 0 : i32
    %c0_i32_0 = arith.constant 0 : i32
    %c0_i32_1 = arith.constant 0 : i32
    return %c0_i32, %c0_i32_0 : i32, i32
  }
  func.func @transform_3(%arg0: i32) -> (i32, i32) {
    %c0_i32 = arith.constant 0 : i32
    %c0_i32_0 = arith.constant 0 : i32
    %c0_i32_1 = arith.constant 0 : i32
    return %c0_i32, %c0_i32_0 : i32, i32
  }
  func.func @transform_4(%arg0: i32) -> (i32, i32) {
    %c0_i32 = arith.constant 0 : i32
    %c0_i32_0 = arith.constant 0 : i32
    %c0_i32_1 = arith.constant 0 : i32
    return %c0_i32, %c0_i32_0 : i32, i32
  }
  func.func @transform_5(%arg0: i32) -> (i32, i32) {
    %c0_i32 = arith.constant 0 : i32
    %c0_i32_0 = arith.constant 0 : i32
    %c0_i32_1 = arith.constant 0 : i32
    return %c0_i32, %c0_i32_0 : i32, i32
  }
  func.func @transform_6(%arg0: i32) -> (i32, i32) {
    %c0_i32 = arith.constant 0 : i32
    %c0_i32_0 = arith.constant 0 : i32
    %c0_i32_1 = arith.constant 0 : i32
    return %c0_i32, %c0_i32_0 : i32, i32
  }
  func.func @transform_7(%arg0: i32) -> (i32, i32) {
    %c0_i32 = arith.constant 0 : i32
    %c0_i32_0 = arith.constant 0 : i32
    %c0_i32_1 = arith.constant 0 : i32
    return %c0_i32, %c0_i32_0 : i32, i32
  }
  func.func @transform_8(%arg0: i32) -> (i32, i32) {
    %c0_i32 = arith.constant 0 : i32
    %c0_i32_0 = arith.constant 0 : i32
    return %c0_i32, %arg0 : i32, i32
  }
}

</mosaic_0001>

<llo_original>
// kernel: tpu_custom_call.1
$region0: #{tpu_custom_call.1}
  #allocation0 [shape = 'u32[]', space=smem, size = 0x4, offset = 0x4, fixed_abs, tag = 'smem constant byte address 0x4 - core index']
  #allocation1 [shape = 'u32[144,128]{1,0:T(1,128)}', space=vmem, size = 0x12000, scoped, tag = 'internal scratch']
  %s0 = inlined_call_operand.vmem [shape: f32[36,512], index: 0, kind: input, shape index: {}]
  %s1 = inlined_call_operand.vmem [shape: f32[9,256], index: 1, kind: input, shape index: {}]
  %s2 = inlined_call_operand.vmem [shape: f32[36,1], index: 2, kind: input, shape index: {}]
  %s3 = inlined_call_operand.vmem [shape: f32[36,1], index: 3, kind: input, shape index: {}]
  %s4 = inlined_call_operand.vmem [shape: f32[72,36], index: 4, kind: input, shape index: {}]
  %s5 = inlined_call_operand.vmem [shape: f32[72,1], index: 5, kind: input, shape index: {}]
  %s6 = inlined_call_operand.vmem [shape: f32[36,72], index: 6, kind: input, shape index: {}]
  %s7 = inlined_call_operand.vmem [shape: f32[36,1], index: 7, kind: input, shape index: {}]
  %s8 = inlined_call_operand.hbm [shape: f32[36,512], index: 8, kind: output, shape index: {}]
  %s9 = sld [smem:[#allocation0]]
  $region88: #{tpu_custom_call.1} parent=0
    _
  %s11 = ssub.s32 1, %s9
  %s12 = scalar_select 0, %s11, %s9
  $region1: #{tpu_custom_call.1} parent=0
    #allocation2 [shape = 'u8[81920]{0}', space=vmem, size = 0x14000, scoped, tag = 'input window, operand 0']
    #allocation3 [shape = 'u8[81920]{0}', space=vmem, size = 0x14000, scoped, tag = 'output window, operand 0']
    #allocation4 [shape = 's32[2]{0}', space=sflag, size = 0x8, scoped, tag = 'scoped memory for tpu_custom_call.1']
    %13 = vsyncpa [#allocation4], 0
    %s14 = scalar_lea.sflag [#allocation4], 1
    %15 = vsyncpa %s14, 0
    loop: start=0, step=1, limit=4
    $region2: #{tpu_custom_call.1} parent=1 // loop_pre_header
      _
    $region3: #{tpu_custom_call.1} parent=1 // loop_header
      %s17 = sphi 0, %s21
      %p18 = scmp.ge.s32.totalorder %s17, 4
      %s27 = sphi 0, %s29
      %s30 = sphi 0, %s27
      %s31 = sphi 0, %s30
      %s47 = sphi 0, %s31
      %s51 = sphi 0, %s51
      %s53 = sphi 0, %s51
      %s54 = sphi 0, %s53
      %s68 = sphi 0, %s54
      %s72 = sphi 0, %s72
      %s74 = sphi 0, %s72
      %s75 = sphi 0, %s74
      %s89 = sphi 0, %s75
      %s93 = sphi 0, %s93
      %s95 = sphi 0, %s93
      %s96 = sphi 0, %s95
      %s110 = sphi 0, %s96
      %s114 = sphi 0, %s114
      %s116 = sphi 0, %s114
      %s117 = sphi 0, %s116
      %s131 = sphi 0, %s117
      %s135 = sphi 0, %s135
      %s137 = sphi 0, %s135
      %s138 = sphi 0, %s137
      %s152 = sphi 0, %s138
      %s156 = sphi 0, %s156
      %s158 = sphi 0, %s156
      %s159 = sphi 0, %s158
      %s173 = sphi 0, %s159
      %s177 = sphi 0, %s177
      %s179 = sphi 0, %s177
      %s180 = sphi 0, %s179
      %s194 = sphi 0, %s180
      %s200 = sphi 0, %s202
      %s203 = sphi 0, %s200
      %s204 = sphi 0, %s203
      %s220 = sphi 0, %s204
    $region4: #{tpu_custom_call.1} parent=1 // loop_header_branch
      %20 = sbr.rel (%p18) target = $region8
    $region5: #{tpu_custom_call.1} parent=1 // loop_body
      %s22 = ssub.s32 %s17, 1
      %s23 = ssub.s32 %s17, 2
      %s24 = sadd.s32 %s17, 1
      %s25 = ssub.s32 %s17, %s24
      %p26 = scmp.eq.s32.totalorder %s25, 0
      %s28 = sadd.s32 %s27, 1
      %s29 = scalar_select %p26, %s27, %s28
      %p32 = pneg %p26
      %p33 = scmp.eq.s32.totalorder %s17, 1
      %p34 = por %p32, %p33
      %p35 = scmp.ne.s32.totalorder %s27, %s30
      %p36 = scmp.eq.s32.totalorder %s17, 0
      %p37 = por %p35, %p36
      %p38 = scmp.ne.s32.totalorder %s27, %s30
      %p39 = scmp.eq.s32.totalorder %s22, 1
      %p40 = por %p38, %p39
      %p41 = scmp.ne.s32.totalorder %s30, %s31
      %p42 = scmp.eq.s32.totalorder %s22, 0
      %p43 = por %p41, %p42
      %p44 = scmp.ne.s32.totalorder %s30, %s31
      %p45 = scmp.eq.s32.totalorder %s23, 1
      %p46 = por %p44, %p45
      %p48 = scmp.ne.s32.totalorder %s31, %s47
      %p49 = scmp.eq.s32.totalorder %s23, 0
      %p50 = por %p48, %p49
      %s52 = sadd.s32 %s51, 1
      %p55 = scmp.eq.s32.totalorder %s17, 1
      %p56 = scmp.ne.s32.totalorder %s51, %s53
      %p57 = scmp.eq.s32.totalorder %s17, 0
      %p58 = por %p56, %p57
      %p59 = scmp.ne.s32.totalorder %s51, %s53
      %p60 = scmp.eq.s32.totalorder %s22, 1
      %p61 = por %p59, %p60
      %p62 = scmp.ne.s32.totalorder %s53, %s54
      %p63 = scmp.eq.s32.totalorder %s22, 0
      %p64 = por %p62, %p63
      %p65 = scmp.ne.s32.totalorder %s53, %s54
      %p66 = scmp.eq.s32.totalorder %s23, 1
      %p67 = por %p65, %p66
      %p69 = scmp.ne.s32.totalorder %s54, %s68
      %p70 = scmp.eq.s32.totalorder %s23, 0
      %p71 = por %p69, %p70
      %s73 = sadd.s32 %s72, 1
      %p76 = scmp.eq.s32.totalorder %s17, 1
      %p77 = scmp.ne.s32.totalorder %s72, %s74
      %p78 = scmp.eq.s32.totalorder %s17, 0
      %p79 = por %p77, %p78
      %p80 = scmp.ne.s32.totalorder %s72, %s74
      %p81 = scmp.eq.s32.totalorder %s22, 1
      %p82 = por %p80, %p81
      %p83 = scmp.ne.s32.totalorder %s74, %s75
      %p84 = scmp.eq.s32.totalorder %s22, 0
      %p85 = por %p83, %p84
      %p86 = scmp.ne.s32.totalorder %s74, %s75
      %p87 = scmp.eq.s32.totalorder %s23, 1
      %p88 = por %p86, %p87
      %p90 = scmp.ne.s32.totalorder %s75, %s89
      %p91 = scmp.eq.s32.totalorder %s23, 0
      %p92 = por %p90, %p91
      %s94 = sadd.s32 %s93, 1
      %p97 = scmp.eq.s32.totalorder %s17, 1
      %p98 = scmp.ne.s32.totalorder %s93, %s95
      %p99 = scmp.eq.s32.totalorder %s17, 0
      %p100 = por %p98, %p99
      %p101 = scmp.ne.s32.totalorder %s93, %s95
      %p102 = scmp.eq.s32.totalorder %s22, 1
      %p103 = por %p101, %p102
      %p104 = scmp.ne.s32.totalorder %s95, %s96
      %p105 = scmp.eq.s32.totalorder %s22, 0
      %p106 = por %p104, %p105
      %p107 = scmp.ne.s32.totalorder %s95, %s96
      %p108 = scmp.eq.s32.totalorder %s23, 1
      %p109 = por %p107, %p108
      %p111 = scmp.ne.s32.totalorder %s96, %s110
      %p112 = scmp.eq.s32.totalorder %s23, 0
      %p113 = por %p111, %p112
      %s115 = sadd.s32 %s114, 1
      %p118 = scmp.eq.s32.totalorder %s17, 1
      %p119 = scmp.ne.s32.totalorder %s114, %s116
      %p120 = scmp.eq.s32.totalorder %s17, 0
      %p121 = por %p119, %p120
      %p122 = scmp.ne.s32.totalorder %s114, %s116
      %p123 = scmp.eq.s32.totalorder %s22, 1
      %p124 = por %p122, %p123
      %p125 = scmp.ne.s32.totalorder %s116, %s117
      %p126 = scmp.eq.s32.totalorder %s22, 0
      %p127 = por %p125, %p126
      %p128 = scmp.ne.s32.totalorder %s116, %s117
      %p129 = scmp.eq.s32.totalorder %s23, 1
      %p130 = por %p128, %p129
      %p132 = scmp.ne.s32.totalorder %s117, %s131
      %p133 = scmp.eq.s32.totalorder %s23, 0
      %p134 = por %p132, %p133
      %s136 = sadd.s32 %s135, 1
      %p139 = scmp.eq.s32.totalorder %s17, 1
      %p140 = scmp.ne.s32.totalorder %s135, %s137
      %p141 = scmp.eq.s32.totalorder %s17, 0
      %p142 = por %p140, %p141
      %p143 = scmp.ne.s32.totalorder %s135, %s137
      %p144 = scmp.eq.s32.totalorder %s22, 1
      %p145 = por %p143, %p144
      %p146 = scmp.ne.s32.totalorder %s137, %s138
      %p147 = scmp.eq.s32.totalorder %s22, 0
      %p148 = por %p146, %p147
      %p149 = scmp.ne.s32.totalorder %s137, %s138
      %p150 = scmp.eq.s32.totalorder %s23, 1
      %p151 = por %p149, %p150
      %p153 = scmp.ne.s32.totalorder %s138, %s152
      %p154 = scmp.eq.s32.totalorder %s23, 0
      %p155 = por %p153, %p154
      %s157 = sadd.s32 %s156, 1
      %p160 = scmp.eq.s32.totalorder %s17, 1
      %p161 = scmp.ne.s32.totalorder %s156, %s158
      %p162 = scmp.eq.s32.totalorder %s17, 0
      %p163 = por %p161, %p162
      %p164 = scmp.ne.s32.totalorder %s156, %s158
      %p165 = scmp.eq.s32.totalorder %s22, 1
      %p166 = por %p164, %p165
      %p167 = scmp.ne.s32.totalorder %s158, %s159
      %p168 = scmp.eq.s32.totalorder %s22, 0
      %p169 = por %p167, %p168
      %p170 = scmp.ne.s32.totalorder %s158, %s159
      %p171 = scmp.eq.s32.totalorder %s23, 1
      %p172 = por %p170, %p171
      %p174 = scmp.ne.s32.totalorder %s159, %s173
      %p175 = scmp.eq.s32.totalorder %s23, 0
      %p176 = por %p174, %p175
      %s178 = sadd.s32 %s177, 1
      %p181 = scmp.eq.s32.totalorder %s17, 1
      %p182 = scmp.ne.s32.totalorder %s177, %s179
      %p183 = scmp.eq.s32.totalorder %s17, 0
      %p184 = por %p182, %p183
      %p185 = scmp.ne.s32.totalorder %s177, %s179
      %p186 = scmp.eq.s32.totalorder %s22, 1
      %p187 = por %p185, %p186
      %p188 = scmp.ne.s32.totalorder %s179, %s180
      %p189 = scmp.eq.s32.totalorder %s22, 0
      %p190 = por %p188, %p189
      %p191 = scmp.ne.s32.totalorder %s179, %s180
      %p192 = scmp.eq.s32.totalorder %s23, 1
      %p193 = por %p191, %p192
      %p195 = scmp.ne.s32.totalorder %s180, %s194
      %p196 = scmp.eq.s32.totalorder %s23, 0
      %p197 = por %p195, %p196
      %s198 = ssub.s32 %s17, %s24
      %p199 = scmp.eq.s32.totalorder %s198, 0
      %s201 = sadd.s32 %s200, 1
      %s202 = scalar_select %p199, %s200, %s201
      %p205 = pneg %p199
      %p206 = scmp.eq.s32.totalorder %s17, 1
      %p207 = por %p205, %p206
      %p208 = scmp.ne.s32.totalorder %s200, %s203
      %p209 = scmp.eq.s32.totalorder %s17, 0
      %p210 = por %p208, %p209
      %p211 = scmp.ne.s32.totalorder %s200, %s203
      %p212 = scmp.eq.s32.totalorder %s22, 1
      %p213 = por %p211, %p212
      %p214 = scmp.ne.s32.totalorder %s203, %s204
      %p215 = scmp.eq.s32.totalorder %s22, 0
      %p216 = por %p214, %p215
      %p217 = scmp.ne.s32.totalorder %s203, %s204
      %p218 = scmp.eq.s32.totalorder %s23, 1
      %p219 = por %p217, %p218
      %p221 = scmp.ne.s32.totalorder %s204, %s220
      %p222 = scmp.eq.s32.totalorder %s23, 0
      %p223 = por %p221, %p222
      %p224 = scmp.le.s32.totalorder 1, %s17
      %p225 = scmp.lt.s32.totalorder %s17, 3
      %p226 = pnand %p224, %p225
      %p227 = pneg %p226
      // Predicated region
      $region9: #{tpu_custom_call.1} parent=5 // pred_check
        _
      $region10: #{tpu_custom_call.1} parent=5 // pred_check_branch
        %229 = sbr.rel (%p226) target = $region12
      $region11: #{tpu_custom_call.1} parent=5 // pred_region
        %s230 = ssub.s32 %s17, 1
        // Predicated region
        $region13: #{tpu_custom_call.1} parent=11 // pred_check
          %p231 = pneg %p64
        $region14: #{tpu_custom_call.1} parent=11 // pred_check_branch
          %233 = sbr.rel (%p231) target = $region16
        $region15: #{tpu_custom_call.1} parent=11 // pred_region
          _
        $region16: #{tpu_custom_call.1} parent=11 // pred_fallthru
          _
        // Predicated region
        $region17: #{tpu_custom_call.1} parent=11 // pred_check
          %p234 = pneg %p85
        $region18: #{tpu_custom_call.1} parent=11 // pred_check_branch
          %236 = sbr.rel (%p234) target = $region20
        $region19: #{tpu_custom_call.1} parent=11 // pred_region
          _
        $region20: #{tpu_custom_call.1} parent=11 // pred_fallthru
          _
        // Predicated region
        $region21: #{tpu_custom_call.1} parent=11 // pred_check
          %p237 = pneg %p106
        $region22: #{tpu_custom_call.1} parent=11 // pred_check_branch
          %239 = sbr.rel (%p237) target = $region24
        $region23: #{tpu_custom_call.1} parent=11 // pred_region
          _
        $region24: #{tpu_custom_call.1} parent=11 // pred_fallthru
          _
        // Predicated region
        $region25: #{tpu_custom_call.1} parent=11 // pred_check
          %p240 = pneg %p127
        $region26: #{tpu_custom_call.1} parent=11 // pred_check_branch
          %242 = sbr.rel (%p240) target = $region28
        $region27: #{tpu_custom_call.1} parent=11 // pred_region
          _
        $region28: #{tpu_custom_call.1} parent=11 // pred_fallthru
          _
        // Predicated region
        $region29: #{tpu_custom_call.1} parent=11 // pred_check
          %p243 = pneg %p148
        $region30: #{tpu_custom_call.1} parent=11 // pred_check_branch
          %245 = sbr.rel (%p243) target = $region32
        $region31: #{tpu_custom_call.1} parent=11 // pred_region
          _
        $region32: #{tpu_custom_call.1} parent=11 // pred_fallthru
          _
        // Predicated region
        $region33: #{tpu_custom_call.1} parent=11 // pred_check
          %p246 = pneg %p169
        $region34: #{tpu_custom_call.1} parent=11 // pred_check_branch
          %248 = sbr.rel (%p246) target = $region36
        $region35: #{tpu_custom_call.1} parent=11 // pred_region
          _
        $region36: #{tpu_custom_call.1} parent=11 // pred_fallthru
          _
        // Predicated region
        $region37: #{tpu_custom_call.1} parent=11 // pred_check
          %p249 = pneg %p190
        $region38: #{tpu_custom_call.1} parent=11 // pred_check_branch
          %251 = sbr.rel (%p249) target = $region40
        $region39: #{tpu_custom_call.1} parent=11 // pred_region
          _
        $region40: #{tpu_custom_call.1} parent=11 // pred_fallthru
          _
      $region12: #{tpu_custom_call.1} parent=5 // pred_fallthru
        _
      %p252 = scmp.lt.s32.totalorder %s17, 2
      // Predicated region
      $region41: #{tpu_custom_call.1} parent=5 // pred_check
        %p253 = pneg %p252
      $region42: #{tpu_custom_call.1} parent=5 // pred_check_branch
        %255 = sbr.rel (%p253) target = $region44
      $region43: #{tpu_custom_call.1} parent=5 // pred_region
        // Predicated region
        $region45: #{tpu_custom_call.1} parent=43 // pred_check
          %p256 = pneg %p37
        $region46: #{tpu_custom_call.1} parent=43 // pred_check_branch
          %258 = sbr.rel (%p256) target = $region48
        $region47: #{tpu_custom_call.1} parent=43 // pred_region
          %s259 = sand.u32 %s27, 1
          %s260 = sand.u32 %s27, 1
          %s261 = smul.addr %s260, 80
          %s262 = scalar_lea.vmem [#allocation2], %s261
          %s263 = smul.u32 2, %s17
          %s264 = smul.addr %s263, 8
          %s265 = scalar_lea.vmem %s0, %s264
          // Predicated region
          $region49: #{tpu_custom_call.1} parent=47 // pred_check
            _
          $region50: #{tpu_custom_call.1} parent=47 // pred_check_branch
            %267 = sbr.rel (0) target = $region52
          $region51: #{tpu_custom_call.1} parent=47 // pred_region
            // Predicated region
            $region53: #{tpu_custom_call.1} parent=51 // pred_check
              _
            $region54: #{tpu_custom_call.1} parent=51 // pred_check_branch
              %269 = sbr.rel (0) target = $region56
            $region55: #{tpu_custom_call.1} parent=51 // pred_region
              loop: start=0, step=1, limit=1
              $region57: #{tpu_custom_call.1} parent=55 // loop_pre_header
                _
              $region58: #{tpu_custom_call.1} parent=55 // loop_header
                %s271 = sphi 0, %s275
                %p272 = scmp.ge.s32.totalorder %s271, 1
                %s276 = sphi %s265, %s265
                %s277 = sphi %s262, %s262
              $region59: #{tpu_custom_call.1} parent=55 // loop_header_branch
                %274 = sbr.rel (%p272) target = $region63
              $region60: #{tpu_custom_call.1} parent=55 // loop_body
                %v278 = vld [vmem:[%s276] sm:$0xff]
                %279 = vst [vmem:[%s277] sm:$0xff] %v278
                %v280 = vld [vmem:[%s276 + $0x8] sm:$0xff]
                %281 = vst [vmem:[%s277 + $0x8] sm:$0xff] %v280
                %v282 = vld [vmem:[%s276 + $0x20] sm:$0xff]
                %283 = vst [vmem:[%s277 + $0x10] sm:$0xff] %v282
                %v284 = vld [vmem:[%s276 + $0x28] sm:$0xff]
                %285 = vst [vmem:[%s277 + $0x18] sm:$0xff] %v284
                %v286 = vld [vmem:[%s276 + $0x40] sm:$0xff]
                %287 = vst [vmem:[%s277 + $0x20] sm:$0xff] %v286
                %v288 = vld [vmem:[%s276 + $0x48] sm:$0xff]
                %289 = vst [vmem:[%s277 + $0x28] sm:$0xff] %v288
                %v290 = vld [vmem:[%s276 + $0x60] sm:$0xff]
                %291 = vst [vmem:[%s277 + $0x30] sm:$0xff] %v290
                %v292 = vld [vmem:[%s276 + $0x68] sm:$0xff]
                %293 = vst [vmem:[%s277 + $0x38] sm:$0xff] %v292
                %v294 = vld [vmem:[%s276 + $0x80] sm:$0xff]
                %295 = vst [vmem:[%s277 + $0x40] sm:$0xff] %v294
                %v296 = vld [vmem:[%s276 + $0x88] sm:$0xff]
                %297 = vst [vmem:[%s277 + $0x48] sm:$0xff] %v296
              $region61: #{tpu_custom_call.1} parent=55 // loop_footer
                %s275 = sadd.s32 1, %s271
              $region62: #{tpu_custom_call.1} parent=55 // loop_footer_branch
                %270 = sbr.rel target = $region58
              $region63: #{tpu_custom_call.1} parent=55 // loop_exit
                _
            $region56: #{tpu_custom_call.1} parent=51 // pred_fallthru
              _
            // Predicated region
            $region64: #{tpu_custom_call.1} parent=51 // pred_check
              _
            $region65: #{tpu_custom_call.1} parent=51 // pred_check_branch
              %299 = sbr.rel target = $region67
            $region66: #{tpu_custom_call.1} parent=51 // pred_region
              _
            $region67: #{tpu_custom_call.1} parent=51 // pred_fallthru
              _
          $region52: #{tpu_custom_call.1} parent=47 // pred_fallthru
            _
          %300 = vnop
        $region48: #{tpu_custom_call.1} parent=43 // pred_fallthru
          _
      $region44: #{tpu_custom_call.1} parent=5 // pred_fallthru
        _
      %p301 = scmp.le.s32.totalorder 1, %s17
      %p302 = scmp.lt.s32.totalorder %s17, 3
      %p303 = pnand %p301, %p302
      %p304 = pneg %p303
      // Predicated region
      $region68: #{tpu_custom_call.1} parent=5 // pred_check
        _
      $region69: #{tpu_custom_call.1} parent=5 // pred_check_branch
        %306 = sbr.rel (%p303) target = $region71
      $region70: #{tpu_custom_call.1} parent=5 // pred_region
        %s307 = ssub.s32 %s17, 1
        %s308 = sand.u32 %s30, 1
        %s309 = sand.u32 %s30, 1
        %s310 = smul.addr %s309, 80
        %s311 = scalar_lea.vmem [#allocation2], %s310
        // Predicated region
        $region72: #{tpu_custom_call.1} parent=70 // pred_check
          %p312 = pneg %p43
        $region73: #{tpu_custom_call.1} parent=70 // pred_check_branch
          %314 = sbr.rel (%p312) target = $region75
        $region74: #{tpu_custom_call.1} parent=70 // pred_region
          _
        $region75: #{tpu_custom_call.1} parent=70 // pred_fallthru
          _
        %s315 = sand.u32 %s30, 1
        %s316 = sand.u32 %s30, 1
        %s317 = smul.addr %s316, 80
        %s318 = scalar_lea.vmem [#allocation2], %s317
        %p319 = pneg %p43
        %p320 = pneg %p40
        %p321 = pneg %p64
        %p322 = pneg %p61
        %p323 = pneg %p85
        %p324 = pneg %p82
        %p325 = pneg %p106
        %p326 = pneg %p103
        %p327 = pneg %p127
        %p328 = pneg %p124
        %p329 = pneg %p148
        %p330 = pneg %p145
        %p331 = pneg %p169
        %p332 = pneg %p166
        %p333 = pneg %p190
        %p334 = pneg %p187
        %p335 = pneg %p216
        %p336 = pneg %p213
        %s337 = sand.u32 %s203, 1
        %s338 = scalar_lea.sflag [#allocation4], %s337
        %s339 = sand.u32 %s203, 1
        %s340 = smul.addr %s339, 80
        %s341 = scalar_lea.vmem [#allocation3], %s340
        %s342 = smul.u32 2, %s22
        %s343 = smul.u32 2, %s22
        %v344 = vld [vmem:[%s311] sm:$0xff]
        %v345 = vld [vmem:[%s311 + $0x8] sm:$0xff]
        %v346 = vld [vmem:[%s311 + $0x10] sm:$0xff]
        %v347 = vld [vmem:[%s311 + $0x18] sm:$0xff]
        %v348 = vld [vmem:[%s311 + $0x20] sm:$0xff]
        %v349 = vld [vmem:[%s311 + $0x28] sm:$0xff]
        %v350 = vld [vmem:[%s311 + $0x30] sm:$0xff]
        %v351 = vld [vmem:[%s311 + $0x38] sm:$0xff]
        %v352 = vld [vmem:[%s311 + $0x40] sm:$0xf]
        %v353 = vld [vmem:[%s311 + $0x48] sm:$0xf]
        %v354 = vld [vmem:[%s2] sm:$0xff]
        %v355 = vld [vmem:[%s2 + $0x8] sm:$0xff]
        %v356 = vld [vmem:[%s2 + $0x10] sm:$0xff]
        %v357 = vld [vmem:[%s2 + $0x18] sm:$0xff]
        %v358 = vld [vmem:[%s2 + $0x20] sm:$0xf]
        %360 = vset.pattern.permute.xlu0 0
        %361 = vperm.xlu0 %360, %v354
        %v362 = vpop.permute.xlu0 %361
        %365 = vset.pattern.permute.xlu0 0
        %366 = vperm.xlu0 %365, %v355
        %v367 = vpop.permute.xlu0 %366
        %370 = vset.pattern.permute.xlu0 0
        %371 = vperm.xlu0 %370, %v356
        %v372 = vpop.permute.xlu0 %371
        %375 = vset.pattern.permute.xlu0 0
        %376 = vperm.xlu0 %375, %v357
        %v377 = vpop.permute.xlu0 %376
        %380 = vset.pattern.permute.xlu0 0
        %381 = vperm.xlu0 %380, %v358
        %v382 = vpop.permute.xlu0 %381
        %v384 = vmul.f32 %v344, %v362
        %v385 = vmul.f32 %v345, %v362
        %v386 = vmul.f32 %v346, %v367
        %v387 = vmul.f32 %v347, %v367
        %v388 = vmul.f32 %v348, %v372
        %v389 = vmul.f32 %v349, %v372
        %v390 = vmul.f32 %v350, %v377
        %v391 = vmul.f32 %v351, %v377
        %v392 = vmul.f32 %v352, %v382
        %v393 = vmul.f32 %v353, %v382
        %v394 = vld [vmem:[%s3] sm:$0xff]
        %v395 = vld [vmem:[%s3 + $0x8] sm:$0xff]
        %v396 = vld [vmem:[%s3 + $0x10] sm:$0xff]
        %v397 = vld [vmem:[%s3 + $0x18] sm:$0xff]
        %v398 = vld [vmem:[%s3 + $0x20] sm:$0xf]
        %400 = vset.pattern.permute.xlu0 0
        %401 = vperm.xlu0 %400, %v394
        %v402 = vpop.permute.xlu0 %401
        %405 = vset.pattern.permute.xlu0 0
        %406 = vperm.xlu0 %405, %v395
        %v407 = vpop.permute.xlu0 %406
        %410 = vset.pattern.permute.xlu0 0
        %411 = vperm.xlu0 %410, %v396
        %v412 = vpop.permute.xlu0 %411
        %415 = vset.pattern.permute.xlu0 0
        %416 = vperm.xlu0 %415, %v397
        %v417 = vpop.permute.xlu0 %416
        %420 = vset.pattern.permute.xlu0 0
        %421 = vperm.xlu0 %420, %v398
        %v422 = vpop.permute.xlu0 %421
        %v424 = vadd.f32 %v384, %v402
        %v425 = vadd.f32 %v385, %v402
        %v426 = vadd.f32 %v386, %v407
        %v427 = vadd.f32 %v387, %v407
        %v428 = vadd.f32 %v388, %v412
        %v429 = vadd.f32 %v389, %v412
        %v430 = vadd.f32 %v390, %v417
        %v431 = vadd.f32 %v391, %v417
        %v432 = vadd.f32 %v392, %v422
        %v433 = vadd.f32 %v393, %v422
        %v434 = vmul.f32 %v424, 0.70710677
        %v435 = vmul.f32 %v425, 0.70710677
        %v436 = vmul.f32 %v426, 0.70710677
        %v437 = vmul.f32 %v427, 0.70710677
        %v438 = vmul.f32 %v428, 0.70710677
        %v439 = vmul.f32 %v429, 0.70710677
        %v440 = vmul.f32 %v430, 0.70710677
        %v441 = vmul.f32 %v431, 0.70710677
        %v442 = vmul.f32 %v432, 0.70710677
        %v443 = vmul.f32 %v433, 0.70710677
        %v444 = vand.u32 2147483647, %v434
        %v445 = vand.u32 2147483647, %v435
        %v446 = vand.u32 2147483647, %v436
        %v447 = vand.u32 2147483647, %v437
        %v448 = vand.u32 2147483647, %v438
        %v449 = vand.u32 2147483647, %v439
        %v450 = vand.u32 2147483647, %v440
        %v451 = vand.u32 2147483647, %v441
        %v452 = vand.u32 2147483647, %v442
        %v453 = vand.u32 2147483647, %v443
        %v454 = vmul.f32 %v444, 0.3275911
        %v455 = vmul.f32 %v445, 0.3275911
        %v456 = vmul.f32 %v446, 0.3275911
        %v457 = vmul.f32 %v447, 0.3275911
        %v458 = vmul.f32 %v448, 0.3275911
        %v459 = vmul.f32 %v449, 0.3275911
        %v460 = vmul.f32 %v450, 0.3275911
        %v461 = vmul.f32 %v451, 0.3275911
        %v462 = vmul.f32 %v452, 0.3275911
        %v463 = vmul.f32 %v453, 0.3275911
        %v464 = vadd.f32 %v454, 1.0
        %v465 = vadd.f32 %v455, 1.0
        %v466 = vadd.f32 %v456, 1.0
        %v467 = vadd.f32 %v457, 1.0
        %v468 = vadd.f32 %v458, 1.0
        %v469 = vadd.f32 %v459, 1.0
        %v470 = vadd.f32 %v460, 1.0
        %v471 = vadd.f32 %v461, 1.0
        %v472 = vadd.f32 %v462, 1.0
        %v473 = vadd.f32 %v463, 1.0
        %v474 = vrcp.pop %v464
        %v475 = vmul.f32 1.0, %v474
        %v476 = vrcp.pop %v465
        %v477 = vmul.f32 1.0, %v476
        %v478 = vrcp.pop %v466
        %v479 = vmul.f32 1.0, %v478
        %v480 = vrcp.pop %v467
        %v481 = vmul.f32 1.0, %v480
        %v482 = vrcp.pop %v468
        %v483 = vmul.f32 1.0, %v482
        %v484 = vrcp.pop %v469
        %v485 = vmul.f32 1.0, %v484
        %v486 = vrcp.pop %v470
        %v487 = vmul.f32 1.0, %v486
        %v488 = vrcp.pop %v471
        %v489 = vmul.f32 1.0, %v488
        %v490 = vrcp.pop %v472
        %v491 = vmul.f32 1.0, %v490
        %v492 = vrcp.pop %v473
        %v493 = vmul.f32 1.0, %v492
        %v494 = vmul.f32 %v475, 1.0614054
        %v495 = vmul.f32 %v477, 1.0614054
        %v496 = vmul.f32 %v479, 1.0614054
        %v497 = vmul.f32 %v481, 1.0614054
        %v498 = vmul.f32 %v483, 1.0614054
        %v499 = vmul.f32 %v485, 1.0614054
        %v500 = vmul.f32 %v487, 1.0614054
        %v501 = vmul.f32 %v489, 1.0614054
        %v502 = vmul.f32 %v491, 1.0614054
        %v503 = vmul.f32 %v493, 1.0614054
        %v504 = vsub.f32 %v494, 1.4531521
        %v505 = vsub.f32 %v495, 1.4531521
        %v506 = vsub.f32 %v496, 1.4531521
        %v507 = vsub.f32 %v497, 1.4531521
        %v508 = vsub.f32 %v498, 1.4531521
        %v509 = vsub.f32 %v499, 1.4531521
        %v510 = vsub.f32 %v500, 1.4531521
        %v511 = vsub.f32 %v501, 1.4531521
        %v512 = vsub.f32 %v502, 1.4531521
        %v513 = vsub.f32 %v503, 1.4531521
        %v514 = vmul.f32 %v504, %v475
        %v515 = vmul.f32 %v505, %v477
        %v516 = vmul.f32 %v506, %v479
        %v517 = vmul.f32 %v507, %v481
        %v518 = vmul.f32 %v508, %v483
        %v519 = vmul.f32 %v509, %v485
        %v520 = vmul.f32 %v510, %v487
        %v521 = vmul.f32 %v511, %v489
        %v522 = vmul.f32 %v512, %v491
        %v523 = vmul.f32 %v513, %v493
        %v524 = vadd.f32 %v514, 1.4214138
        %v525 = vadd.f32 %v515, 1.4214138
        %v526 = vadd.f32 %v516, 1.4214138
        %v527 = vadd.f32 %v517, 1.4214138
        %v528 = vadd.f32 %v518, 1.4214138
        %v529 = vadd.f32 %v519, 1.4214138
        %v530 = vadd.f32 %v520, 1.4214138
        %v531 = vadd.f32 %v521, 1.4214138
        %v532 = vadd.f32 %v522, 1.4214138
        %v533 = vadd.f32 %v523, 1.4214138
        %v534 = vmul.f32 %v524, %v475
        %v535 = vmul.f32 %v525, %v477
        %v536 = vmul.f32 %v526, %v479
        %v537 = vmul.f32 %v527, %v481
        %v538 = vmul.f32 %v528, %v483
        %v539 = vmul.f32 %v529, %v485
        %v540 = vmul.f32 %v530, %v487
        %v541 = vmul.f32 %v531, %v489
        %v542 = vmul.f32 %v532, %v491
        %v543 = vmul.f32 %v533, %v493
        %v544 = vsub.f32 %v534, 0.28449672
        %v545 = vsub.f32 %v535, 0.28449672
        %v546 = vsub.f32 %v536, 0.28449672
        %v547 = vsub.f32 %v537, 0.28449672
        %v548 = vsub.f32 %v538, 0.28449672
        %v549 = vsub.f32 %v539, 0.28449672
        %v550 = vsub.f32 %v540, 0.28449672
        %v551 = vsub.f32 %v541, 0.28449672
        %v552 = vsub.f32 %v542, 0.28449672
        %v553 = vsub.f32 %v543, 0.28449672
        %v554 = vmul.f32 %v544, %v475
        %v555 = vmul.f32 %v545, %v477
        %v556 = vmul.f32 %v546, %v479
        %v557 = vmul.f32 %v547, %v481
        %v558 = vmul.f32 %v548, %v483
        %v559 = vmul.f32 %v549, %v485
        %v560 = vmul.f32 %v550, %v487
        %v561 = vmul.f32 %v551, %v489
        %v562 = vmul.f32 %v552, %v491
        %v563 = vmul.f32 %v553, %v493
        %v564 = vadd.f32 %v554, 0.2548296
        %v565 = vadd.f32 %v555, 0.2548296
        %v566 = vadd.f32 %v556, 0.2548296
        %v567 = vadd.f32 %v557, 0.2548296
        %v568 = vadd.f32 %v558, 0.2548296
        %v569 = vadd.f32 %v559, 0.2548296
        %v570 = vadd.f32 %v560, 0.2548296
        %v571 = vadd.f32 %v561, 0.2548296
        %v572 = vadd.f32 %v562, 0.2548296
        %v573 = vadd.f32 %v563, 0.2548296
        %v574 = vmul.f32 %v564, %v475
        %v575 = vmul.f32 %v565, %v477
        %v576 = vmul.f32 %v566, %v479
        %v577 = vmul.f32 %v567, %v481
        %v578 = vmul.f32 %v568, %v483
        %v579 = vmul.f32 %v569, %v485
        %v580 = vmul.f32 %v570, %v487
        %v581 = vmul.f32 %v571, %v489
        %v582 = vmul.f32 %v572, %v491
        %v583 = vmul.f32 %v573, %v493
        %v584 = vsub.f32 0.0, %v444
        %v585 = vsub.f32 0.0, %v445
        %v586 = vsub.f32 0.0, %v446
        %v587 = vsub.f32 0.0, %v447
        %v588 = vsub.f32 0.0, %v448
        %v589 = vsub.f32 0.0, %v449
        %v590 = vsub.f32 0.0, %v450
        %v591 = vsub.f32 0.0, %v451
        %v592 = vsub.f32 0.0, %v452
        %v593 = vsub.f32 0.0, %v453
        %v594 = vmul.f32 %v584, %v444
        %v595 = vmul.f32 %v585, %v445
        %v596 = vmul.f32 %v586, %v446
        %v597 = vmul.f32 %v587, %v447
        %v598 = vmul.f32 %v588, %v448
        %v599 = vmul.f32 %v589, %v449
        %v600 = vmul.f32 %v590, %v450
        %v601 = vmul.f32 %v591, %v451
        %v602 = vmul.f32 %v592, %v452
        %v603 = vmul.f32 %v593, %v453
        %v604 = vmul.f32 %v594, 1.442695
        %v605 = vpow.pop %v604
        %v606 = vmul.f32 %v595, 1.442695
        %v607 = vpow.pop %v606
        %v608 = vmul.f32 %v596, 1.442695
        %v609 = vpow.pop %v608
        %v610 = vmul.f32 %v597, 1.442695
        %v611 = vpow.pop %v610
        %v612 = vmul.f32 %v598, 1.442695
        %v613 = vpow.pop %v612
        %v614 = vmul.f32 %v599, 1.442695
        %v615 = vpow.pop %v614
        %v616 = vmul.f32 %v600, 1.442695
        %v617 = vpow.pop %v616
        %v618 = vmul.f32 %v601, 1.442695
        %v619 = vpow.pop %v618
        %v620 = vmul.f32 %v602, 1.442695
        %v621 = vpow.pop %v620
        %v622 = vmul.f32 %v603, 1.442695
        %v623 = vpow.pop %v622
        %v624 = vmul.f32 %v574, %v605
        %v625 = vmul.f32 %v575, %v607
        %v626 = vmul.f32 %v576, %v609
        %v627 = vmul.f32 %v577, %v611
        %v628 = vmul.f32 %v578, %v613
        %v629 = vmul.f32 %v579, %v615
        %v630 = vmul.f32 %v580, %v617
        %v631 = vmul.f32 %v581, %v619
        %v632 = vmul.f32 %v582, %v621
        %v633 = vmul.f32 %v583, %v623
        %v634 = vsub.f32 1.0, %v624
        %v635 = vsub.f32 1.0, %v625
        %v636 = vsub.f32 1.0, %v626
        %v637 = vsub.f32 1.0, %v627
        %v638 = vsub.f32 1.0, %v628
        %v639 = vsub.f32 1.0, %v629
        %v640 = vsub.f32 1.0, %v630
        %v641 = vsub.f32 1.0, %v631
        %v642 = vsub.f32 1.0, %v632
        %v643 = vsub.f32 1.0, %v633
        %vm644 = vcmp.ge.f32.partialorder %v434, 0.0
        %vm645 = vcmp.ge.f32.partialorder %v435, 0.0
        %vm646 = vcmp.ge.f32.partialorder %v436, 0.0
        %vm647 = vcmp.ge.f32.partialorder %v437, 0.0
        %vm648 = vcmp.ge.f32.partialorder %v438, 0.0
        %vm649 = vcmp.ge.f32.partialorder %v439, 0.0
        %vm650 = vcmp.ge.f32.partialorder %v440, 0.0
        %vm651 = vcmp.ge.f32.partialorder %v441, 0.0
        %vm652 = vcmp.ge.f32.partialorder %v442, 0.0
        %vm653 = vcmp.ge.f32.partialorder %v443, 0.0
        %v654 = vsub.f32 0.0, %v634
        %v655 = vsub.f32 0.0, %v635
        %v656 = vsub.f32 0.0, %v636
        %v657 = vsub.f32 0.0, %v637
        %v658 = vsub.f32 0.0, %v638
        %v659 = vsub.f32 0.0, %v639
        %v660 = vsub.f32 0.0, %v640
        %v661 = vsub.f32 0.0, %v641
        %v662 = vsub.f32 0.0, %v642
        %v663 = vsub.f32 0.0, %v643
        %v664 = vsel %vm644, %v634, %v654
        %v665 = vsel %vm645, %v635, %v655
        %v666 = vsel %vm646, %v636, %v656
        %v667 = vsel %vm647, %v637, %v657
        %v668 = vsel %vm648, %v638, %v658
        %v669 = vsel %vm649, %v639, %v659
        %v670 = vsel %vm650, %v640, %v660
        %v671 = vsel %vm651, %v641, %v661
        %v672 = vsel %vm652, %v642, %v662
        %v673 = vsel %vm653, %v643, %v663
        %v674 = vmul.f32 %v424, 0.5
        %v675 = vmul.f32 %v425, 0.5
        %v676 = vmul.f32 %v426, 0.5
        %v677 = vmul.f32 %v427, 0.5
        %v678 = vmul.f32 %v428, 0.5
        %v679 = vmul.f32 %v429, 0.5
        %v680 = vmul.f32 %v430, 0.5
        %v681 = vmul.f32 %v431, 0.5
        %v682 = vmul.f32 %v432, 0.5
        %v683 = vmul.f32 %v433, 0.5
        %v684 = vadd.f32 %v664, 1.0
        %v685 = vadd.f32 %v665, 1.0
        %v686 = vadd.f32 %v666, 1.0
        %v687 = vadd.f32 %v667, 1.0
        %v688 = vadd.f32 %v668, 1.0
        %v689 = vadd.f32 %v669, 1.0
        %v690 = vadd.f32 %v670, 1.0
        %v691 = vadd.f32 %v671, 1.0
        %v692 = vadd.f32 %v672, 1.0
        %v693 = vadd.f32 %v673, 1.0
        %v694 = vmul.f32 %v674, %v684
        %v695 = vmul.f32 %v675, %v685
        %v696 = vmul.f32 %v676, %v686
        %v697 = vmul.f32 %v677, %v687
        %v698 = vmul.f32 %v678, %v688
        %v699 = vmul.f32 %v679, %v689
        %v700 = vmul.f32 %v680, %v690
        %v701 = vmul.f32 %v681, %v691
        %v702 = vmul.f32 %v682, %v692
        %v703 = vmul.f32 %v683, %v693
        %v704 = vld [vmem:[%s4] sm:$0xff]
        %v705 = vld [vmem:[%s4 + $0x8] sm:$0xff]
        %v706 = vld [vmem:[%s4 + $0x10] sm:$0xff]
        %v707 = vld [vmem:[%s4 + $0x18] sm:$0xff]
        %v708 = vld [vmem:[%s4 + $0x20] sm:$0xff]
        %v709 = vld [vmem:[%s4 + $0x28] sm:$0xff]
        %v710 = vld [vmem:[%s4 + $0x30] sm:$0xff]
        %v711 = vld [vmem:[%s4 + $0x38] sm:$0xff]
        %v712 = vld [vmem:[%s4 + $0x40] sm:$0xff]
        %v713 = vld [vmem:[%s5] sm:$0xff]
        %v714 = vld [vmem:[%s5 + $0x8] sm:$0xff]
        %v715 = vld [vmem:[%s5 + $0x10] sm:$0xff]
        %v716 = vld [vmem:[%s5 + $0x18] sm:$0xff]
        %v717 = vld [vmem:[%s5 + $0x20] sm:$0xff]
        %v718 = vld [vmem:[%s5 + $0x28] sm:$0xff]
        %v719 = vld [vmem:[%s5 + $0x30] sm:$0xff]
        %v720 = vld [vmem:[%s5 + $0x38] sm:$0xff]
        %v721 = vld [vmem:[%s5 + $0x40] sm:$0xff]
        %723 = vset.pattern.permute.xlu0 0
        %724 = vperm.xlu0 %723, %v713
        %v725 = vpop.permute.xlu0 %724
        %728 = vset.pattern.permute.xlu0 0
        %729 = vperm.xlu0 %728, %v714
        %v730 = vpop.permute.xlu0 %729
        %733 = vset.pattern.permute.xlu0 0
        %734 = vperm.xlu0 %733, %v715
        %v735 = vpop.permute.xlu0 %734
        %738 = vset.pattern.permute.xlu0 0
        %739 = vperm.xlu0 %738, %v716
        %v740 = vpop.permute.xlu0 %739
        %743 = vset.pattern.permute.xlu0 0
        %744 = vperm.xlu0 %743, %v717
        %v745 = vpop.permute.xlu0 %744
        %748 = vset.pattern.permute.xlu0 0
        %749 = vperm.xlu0 %748, %v718
        %v750 = vpop.permute.xlu0 %749
        %753 = vset.pattern.permute.xlu0 0
        %754 = vperm.xlu0 %753, %v719
        %v755 = vpop.permute.xlu0 %754
        %758 = vset.pattern.permute.xlu0 0
        %759 = vperm.xlu0 %758, %v720
        %v760 = vpop.permute.xlu0 %759
        %763 = vset.pattern.permute.xlu0 0
        %764 = vperm.xlu0 %763, %v721
        %v765 = vpop.permute.xlu0 %764
        %vm767 = vcmask 293888
        %v769 = vsel %vm767, %v704, 0
        %v772 = vsel %vm767, %v705, 0
        %v775 = vsel %vm767, %v706, 0
        %v778 = vsel %vm767, %v707, 0
        %v781 = vsel %vm767, %v708, 0
        %v784 = vsel %vm767, %v709, 0
        %v787 = vsel %vm767, %v710, 0
        %v790 = vsel %vm767, %v711, 0
        %v793 = vsel %vm767, %v712, 0
        %vm795 = vcmask 1043456
        %v797 = vsel %vm795, %v702, 0
        %v800 = vsel %vm795, %v703, 0
        %802 = vmatprep.subr.mxu0 %v695
        %803 = vmatpush1.msra.mxu0 %v694
        %804 = vmatprep.subr.mxu0 %v697
        %805 = vmatpush1.msra.mxu0 %v696
        %806 = vmatprep.subr.mxu0 %v699
        %807 = vmatpush1.msra.mxu0 %v698
        %808 = vmatprep.subr.mxu0 %v701
        %809 = vmatpush1.msra.mxu0 %v700
        %810 = vmatprep.subr.mxu0 %v800
        %811 = vmatpush1.msra.mxu0 %v797
        %812 = vmatprep.subr.mxu0 0.0
        %813 = vmatpush1.msra.mxu0 0.0
        %814 = vmatprep.subr.mxu0 0.0
        %815 = vmatpush1.msra.mxu0 0.0
        %816 = vmatprep.subr.mxu0 0.0
        %817 = vmatpush1.msra.mxu0 0.0
        %818 = vmatprep.subr.mxu0 0.0
        %819 = vmatpush1.msra.mxu0 0.0
        %820 = vmatprep.subr.mxu0 0.0
        %821 = vmatpush1.msra.mxu0 0.0
        %822 = vmatprep.subr.mxu0 0.0
        %823 = vmatpush1.msra.mxu0 0.0
        %824 = vmatprep.subr.mxu0 0.0
        %825 = vmatpush1.msra.mxu0 0.0
        %826 = vmatprep.subr.mxu0 0.0
        %827 = vmatpush1.msra.mxu0 0.0
        %828 = vmatprep.subr.mxu0 0.0
        %829 = vmatpush1.msra.mxu0 0.0
        %830 = vmatprep.subr.mxu0 0.0
        %831 = vmatpush1.msra.mxu0 0.0
        %832 = vmatprep.subr.mxu0 0.0
        %833 = vmatpush1.msra.mxu0 0.0
        %834 = vmatprep.subr.mxu0 0.0
        %835 = vmatpush1.msra.mxu0 0.0
        %836 = vmatprep.subr.mxu0 0.0
        %837 = vmatpush1.msra.mxu0 0.0
        %838 = vmatprep.subr.mxu0 0.0
        %839 = vmatpush1.msra.mxu0 0.0
        %840 = vmatprep.subr.mxu0 0.0
        %841 = vmatpush1.msra.mxu0 0.0
        %842 = vmatprep.subr.mxu0 0.0
        %843 = vmatpush1.msra.mxu0 0.0
        %844 = vmatprep.subr.mxu0 0.0
        %845 = vmatpush1.msra.mxu0 0.0
        %846 = vmatprep.subr.mxu0 0.0
        %847 = vmatpush1.msra.mxu0 0.0
        %848 = vmatprep.subr.mxu0 0.0
        %849 = vmatpush1.msra.mxu0 0.0
        %850 = vmatprep.subr.mxu0 0.0
        %851 = vmatpush1.msra.mxu0 0.0
        %852 = vmatprep.subr.mxu0 0.0
        %853 = vmatpush1.msra.mxu0 0.0
        %854 = vmatprep.subr.mxu0 0.0
        %855 = vmatpush1.msra.mxu0 0.0
        %856 = vmatprep.subr.mxu0 0.0
        %857 = vmatpush1.msra.mxu0 0.0
        %858 = vmatprep.subr.mxu0 0.0
        %859 = vmatpush1.msra.mxu0 0.0
        %860 = vmatprep.subr.mxu0 0.0
        %861 = vmatpush1.msra.mxu0 0.0
        %862 = vmatprep.subr.mxu0 0.0
        %863 = vmatpush1.msra.mxu0 0.0
        %864 = vmatprep.subr.mxu0 0.0
        %865 = vmatpush1.msra.mxu0 0.0
        %866 = vmatprep.mubr.f32.mxu0 0.0
        %867 = vmatmul.mubr.f32.gmra.mrb[0].mxu0 %v769
        %v868 = vpop.f32.mrb[0].mxu0
        %v869 = vadd.f32 %v725, %v868
        %v870 = vpop.f32.mrb[0].mxu0
        %v871 = vadd.f32 %v725, %v870
        %872 = vmatprep.mubr.f32.mxu0 0.0
        %873 = vmatmul.mubr.f32.gmra.mrb[0].mxu0 %v772
        %v874 = vpop.f32.mrb[0].mxu0
        %v875 = vadd.f32 %v730, %v874
        %v876 = vpop.f32.mrb[0].mxu0
        %v877 = vadd.f32 %v730, %v876
        %878 = vmatprep.mubr.f32.mxu0 0.0
        %879 = vmatmul.mubr.f32.gmra.mrb[0].mxu0 %v775
        %v880 = vpop.f32.mrb[0].mxu0
        %v881 = vadd.f32 %v735, %v880
        %v882 = vpop.f32.mrb[0].mxu0
        %v883 = vadd.f32 %v735, %v882
        %884 = vmatprep.mubr.f32.mxu0 0.0
        %885 = vmatmul.mubr.f32.gmra.mrb[0].mxu0 %v778
        %v886 = vpop.f32.mrb[0].mxu0
        %v887 = vadd.f32 %v740, %v886
        %v888 = vpop.f32.mrb[0].mxu0
        %v889 = vadd.f32 %v740, %v888
        %890 = vmatprep.mubr.f32.mxu0 0.0
        %891 = vmatmul.mubr.f32.gmra.mrb[0].mxu0 %v781
        %v892 = vpop.f32.mrb[0].mxu0
        %v893 = vadd.f32 %v745, %v892
        %v894 = vpop.f32.mrb[0].mxu0
        %v895 = vadd.f32 %v745, %v894
        %896 = vmatprep.mubr.f32.mxu0 0.0
        %897 = vmatmul.mubr.f32.gmra.mrb[0].mxu0 %v784
        %v898 = vpop.f32.mrb[0].mxu0
        %v899 = vadd.f32 %v750, %v898
        %v900 = vpop.f32.mrb[0].mxu0
        %v901 = vadd.f32 %v750, %v900
        %902 = vmatprep.mubr.f32.mxu0 0.0
        %903 = vmatmul.mubr.f32.gmra.mrb[0].mxu0 %v787
        %v904 = vpop.f32.mrb[0].mxu0
        %v905 = vadd.f32 %v755, %v904
        %v906 = vpop.f32.mrb[0].mxu0
        %v907 = vadd.f32 %v755, %v906
        %908 = vmatprep.mubr.f32.mxu0 0.0
        %909 = vmatmul.mubr.f32.gmra.mrb[0].mxu0 %v790
        %v910 = vpop.f32.mrb[0].mxu0
        %v911 = vadd.f32 %v760, %v910
        %v912 = vpop.f32.mrb[0].mxu0
        %v913 = vadd.f32 %v760, %v912
        %914 = vmatprep.mubr.f32.mxu0 0.0
        %915 = vmatmul.mubr.f32.gmra.mrb[0].mxu0 %v793
        %v916 = vpop.f32.mrb[0].mxu0
        %v917 = vadd.f32 %v765, %v916
        %v918 = vpop.f32.mrb[0].mxu0
        %v919 = vadd.f32 %v765, %v918
        %920 = vdwg.mxu0
        %921 = vrot.lane.b32.xlu0 %v887, 1
        %v922 = vpop.permute.xlu0 %921
        %923 = vrot.lane.b32.xlu0 %v889, 1
        %v924 = vpop.permute.xlu0 %923
        %v925 = vlaneseq
        %v926 = vand.u32 %v925, 127
        %vm927 = vcmp.lt.s32.totalorder %v926, 1
        %v928 = vsel %vm927, %v922, %v924
        %v929 = vsel %vm927, %v924, %v922
        %s930 = scalar_lea.vmem %s1, 3
        %v931 = vld [vmem:[%s930] ss:$8 sm:$0x3]
        %v933 = vlaneseq
        %v934 = vshrl.u32 %v933, 7
        %v935 = vsub.s32 0, %v934
        %v936 = vrot.slane %v931, %v935
        %v937 = vlaneseq
        %v938 = vshrl.u32 %v937, 7
        %v939 = vsub.s32 1, %v938
        %v940 = vrot.slane %v931, %v939
        %v943 = vmul.f32 %v929, %v936
        %v944 = vmul.f32 %v928, %v940
        %945 = vrot.lane.b32.xlu0 %v893, 127
        %v946 = vpop.permute.xlu0 %945
        %947 = vrot.lane.b32.xlu0 %v895, 127
        %v948 = vpop.permute.xlu0 %947
        %vm949 = vcmp.lt.s32.totalorder %v926, 127
        %v950 = vsel %vm949, %v946, %v948
        %v951 = vsel %vm949, %v948, %v946
        %s952 = scalar_lea.vmem %s1, 4
        %v953 = vld [vmem:[%s952] ss:$8 sm:$0x3]
        %v955 = vlaneseq
        %v956 = vshrl.u32 %v955, 7
        %v957 = vsub.s32 0, %v956
        %v958 = vrot.slane %v953, %v957
        %v959 = vlaneseq
        %v960 = vshrl.u32 %v959, 7
        %v961 = vsub.s32 1, %v960
        %v962 = vrot.slane %v953, %v961
        %v965 = vmul.f32 %v950, %v958
        %v966 = vmul.f32 %v951, %v962
        %967 = vrot.lane.b32.xlu0 %v899, 113
        %v968 = vpop.permute.xlu0 %967
        %969 = vrot.lane.b32.xlu0 %v901, 113
        %v970 = vpop.permute.xlu0 %969
        %vm971 = vcmp.lt.s32.totalorder %v926, 113
        %v972 = vsel %vm971, %v968, %v970
        %v973 = vsel %vm971, %v970, %v968
        %s974 = scalar_lea.vmem %s1, 5
        %v975 = vld [vmem:[%s974] ss:$8 sm:$0x3]
        %v977 = vlaneseq
        %v978 = vshrl.u32 %v977, 7
        %v979 = vsub.s32 0, %v978
        %v980 = vrot.slane %v975, %v979
        %v981 = vlaneseq
        %v982 = vshrl.u32 %v981, 7
        %v983 = vsub.s32 1, %v982
        %v984 = vrot.slane %v975, %v983
        %v987 = vmul.f32 %v972, %v980
        %v988 = vmul.f32 %v973, %v984
        %989 = vrot.lane.b32.xlu0 %v905, 111
        %v990 = vpop.permute.xlu0 %989
        %991 = vrot.lane.b32.xlu0 %v907, 111
        %v992 = vpop.permute.xlu0 %991
        %vm993 = vcmp.lt.s32.totalorder %v926, 111
        %v994 = vsel %vm993, %v990, %v992
        %v995 = vsel %vm993, %v992, %v990
        %s996 = scalar_lea.vmem %s1, 6
        %v997 = vld [vmem:[%s996] ss:$8 sm:$0x3]
        %v999 = vlaneseq
        %v1000 = vshrl.u32 %v999, 7
        %v1001 = vsub.s32 0, %v1000
        %v1002 = vrot.slane %v997, %v1001
        %v1003 = vlaneseq
        %v1004 = vshrl.u32 %v1003, 7
        %v1005 = vsub.s32 1, %v1004
        %v1006 = vrot.slane %v997, %v1005
        %v1009 = vmul.f32 %v994, %v1002
        %v1010 = vmul.f32 %v995, %v1006
        %1011 = vrot.lane.b32.xlu0 %v911, 17
        %v1012 = vpop.permute.xlu0 %1011
        %1013 = vrot.lane.b32.xlu0 %v913, 17
        %v1014 = vpop.permute.xlu0 %1013
        %vm1015 = vcmp.lt.s32.totalorder %v926, 17
        %v1016 = vsel %vm1015, %v1012, %v1014
        %v1017 = vsel %vm1015, %v1014, %v1012
        %s1018 = scalar_lea.vmem %s1, 7
        %v1019 = vld [vmem:[%s1018] ss:$8 sm:$0x3]
        %v1021 = vlaneseq
        %v1022 = vshrl.u32 %v1021, 7
        %v1023 = vsub.s32 0, %v1022
        %v1024 = vrot.slane %v1019, %v1023
        %v1025 = vlaneseq
        %v1026 = vshrl.u32 %v1025, 7
        %v1027 = vsub.s32 1, %v1026
        %v1028 = vrot.slane %v1019, %v1027
        %v1031 = vmul.f32 %v1017, %v1024
        %v1032 = vmul.f32 %v1016, %v1028
        %1033 = vrot.lane.b32.xlu0 %v917, 15
        %v1034 = vpop.permute.xlu0 %1033
        %1035 = vrot.lane.b32.xlu0 %v919, 15
        %v1036 = vpop.permute.xlu0 %1035
        %vm1037 = vcmp.lt.s32.totalorder %v926, 15
        %v1038 = vsel %vm1037, %v1034, %v1036
        %v1039 = vsel %vm1037, %v1036, %v1034
        %s1040 = scalar_lea.vmem %s1, 16
        %v1041 = vld [vmem:[%s1040] ss:$8 sm:$0x3]
        %v1043 = vlaneseq
        %v1044 = vshrl.u32 %v1043, 7
        %v1045 = vsub.s32 0, %v1044
        %v1046 = vrot.slane %v1041, %v1045
        %v1047 = vlaneseq
        %v1048 = vshrl.u32 %v1047, 7
        %v1049 = vsub.s32 1, %v1048
        %v1050 = vrot.slane %v1041, %v1049
        %v1053 = vmul.f32 %v1039, %v1046
        %v1054 = vmul.f32 %v1038, %v1050
        %v1055 = vld [vmem:[%s6] sm:$0xff]
        %v1056 = vld [vmem:[%s6 + $0x8] sm:$0xff]
        %v1057 = vld [vmem:[%s6 + $0x10] sm:$0xff]
        %v1058 = vld [vmem:[%s6 + $0x18] sm:$0xff]
        %v1059 = vld [vmem:[%s6 + $0x20] sm:$0xf]
        %v1060 = vld [vmem:[%s7] sm:$0xff]
        %v1061 = vld [vmem:[%s7 + $0x8] sm:$0xff]
        %v1062 = vld [vmem:[%s7 + $0x10] sm:$0xff]
        %v1063 = vld [vmem:[%s7 + $0x18] sm:$0xff]
        %v1064 = vld [vmem:[%s7 + $0x20] sm:$0xf]
        %1066 = vset.pattern.permute.xlu0 0
        %1067 = vperm.xlu0 %1066, %v1060
        %v1068 = vpop.permute.xlu0 %1067
        %1071 = vset.pattern.permute.xlu0 0
        %1072 = vperm.xlu0 %1071, %v1061
        %v1073 = vpop.permute.xlu0 %1072
        %1076 = vset.pattern.permute.xlu0 0
        %1077 = vperm.xlu0 %1076, %v1062
        %v1078 = vpop.permute.xlu0 %1077
        %1081 = vset.pattern.permute.xlu0 0
        %1082 = vperm.xlu0 %1081, %v1063
        %v1083 = vpop.permute.xlu0 %1082
        %1086 = vset.pattern.permute.xlu0 0
        %1087 = vperm.xlu0 %1086, %v1064
        %v1088 = vpop.permute.xlu0 %1087
        %vm1090 = vcmask 588800
        %v1092 = vsel %vm1090, %v1055, 0
        %v1095 = vsel %vm1090, %v1056, 0
        %v1098 = vsel %vm1090, %v1057, 0
        %v1101 = vsel %vm1090, %v1058, 0
        %v1104 = vsel %vm1090, %v1059, 0
        %1106 = vmatprep.subr.mxu0 %v871
        %1107 = vmatpush1.msra.mxu0 %v869
        %1108 = vmatprep.subr.mxu0 %v877
        %1109 = vmatpush1.msra.mxu0 %v875
        %1110 = vmatprep.subr.mxu0 %v883
        %1111 = vmatpush1.msra.mxu0 %v881
        %1112 = vmatprep.subr.mxu0 %v944
        %1113 = vmatpush1.msra.mxu0 %v943
        %1114 = vmatprep.subr.mxu0 %v966
        %1115 = vmatpush1.msra.mxu0 %v965
        %1116 = vmatprep.subr.mxu0 %v988
        %1117 = vmatpush1.msra.mxu0 %v987
        %1118 = vmatprep.subr.mxu0 %v1010
        %1119 = vmatpush1.msra.mxu0 %v1009
        %1120 = vmatprep.subr.mxu0 %v1032
        %1121 = vmatpush1.msra.mxu0 %v1031
        %1122 = vmatprep.subr.mxu0 %v1054
        %1123 = vmatpush1.msra.mxu0 %v1053
        %1124 = vmatprep.subr.mxu0 0.0
        %1125 = vmatpush1.msra.mxu0 0.0
        %1126 = vmatprep.subr.mxu0 0.0
        %1127 = vmatpush1.msra.mxu0 0.0
        %1128 = vmatprep.subr.mxu0 0.0
        %1129 = vmatpush1.msra.mxu0 0.0
        %1130 = vmatprep.subr.mxu0 0.0
        %1131 = vmatpush1.msra.mxu0 0.0
        %1132 = vmatprep.subr.mxu0 0.0
        %1133 = vmatpush1.msra.mxu0 0.0
        %1134 = vmatprep.subr.mxu0 0.0
        %1135 = vmatpush1.msra.mxu0 0.0
        %1136 = vmatprep.subr.mxu0 0.0
        %1137 = vmatpush1.msra.mxu0 0.0
        %1138 = vmatprep.subr.mxu0 0.0
        %1139 = vmatpush1.msra.mxu0 0.0
        %1140 = vmatprep.subr.mxu0 0.0
        %1141 = vmatpush1.msra.mxu0 0.0
        %1142 = vmatprep.subr.mxu0 0.0
        %1143 = vmatpush1.msra.mxu0 0.0
        %1144 = vmatprep.subr.mxu0 0.0
        %1145 = vmatpush1.msra.mxu0 0.0
        %1146 = vmatprep.subr.mxu0 0.0
        %1147 = vmatpush1.msra.mxu0 0.0
        %1148 = vmatprep.subr.mxu0 0.0
        %1149 = vmatpush1.msra.mxu0 0.0
        %1150 = vmatprep.subr.mxu0 0.0
        %1151 = vmatpush1.msra.mxu0 0.0
        %1152 = vmatprep.subr.mxu0 0.0
        %1153 = vmatpush1.msra.mxu0 0.0
        %1154 = vmatprep.subr.mxu0 0.0
        %1155 = vmatpush1.msra.mxu0 0.0
        %1156 = vmatprep.subr.mxu0 0.0
        %1157 = vmatpush1.msra.mxu0 0.0
        %1158 = vmatprep.subr.mxu0 0.0
        %1159 = vmatpush1.msra.mxu0 0.0
        %1160 = vmatprep.subr.mxu0 0.0
        %1161 = vmatpush1.msra.mxu0 0.0
        %1162 = vmatprep.subr.mxu0 0.0
        %1163 = vmatpush1.msra.mxu0 0.0
        %1164 = vmatprep.subr.mxu0 0.0
        %1165 = vmatpush1.msra.mxu0 0.0
        %1166 = vmatprep.subr.mxu0 0.0
        %1167 = vmatpush1.msra.mxu0 0.0
        %1168 = vmatprep.subr.mxu0 0.0
        %1169 = vmatpush1.msra.mxu0 0.0
        %1170 = vmatprep.mubr.f32.mxu0 0.0
        %1171 = vmatmul.mubr.f32.gmra.mrb[0].mxu0 %v1092
        %v1172 = vpop.f32.mrb[0].mxu0
        %v1173 = vadd.f32 %v1068, %v1172
        %v1174 = vpop.f32.mrb[0].mxu0
        %v1175 = vadd.f32 %v1068, %v1174
        %1176 = vmatprep.mubr.f32.mxu0 0.0
        %1177 = vmatmul.mubr.f32.gmra.mrb[0].mxu0 %v1095
        %v1178 = vpop.f32.mrb[0].mxu0
        %v1179 = vadd.f32 %v1073, %v1178
        %v1180 = vpop.f32.mrb[0].mxu0
        %v1181 = vadd.f32 %v1073, %v1180
        %1182 = vmatprep.mubr.f32.mxu0 0.0
        %1183 = vmatmul.mubr.f32.gmra.mrb[0].mxu0 %v1098
        %v1184 = vpop.f32.mrb[0].mxu0
        %v1185 = vadd.f32 %v1078, %v1184
        %v1186 = vpop.f32.mrb[0].mxu0
        %v1187 = vadd.f32 %v1078, %v1186
        %1188 = vmatprep.mubr.f32.mxu0 0.0
        %1189 = vmatmul.mubr.f32.gmra.mrb[0].mxu0 %v1101
        %v1190 = vpop.f32.mrb[0].mxu0
        %v1191 = vadd.f32 %v1083, %v1190
        %v1192 = vpop.f32.mrb[0].mxu0
        %v1193 = vadd.f32 %v1083, %v1192
        %1194 = vmatprep.mubr.f32.mxu0 0.0
        %1195 = vmatmul.mubr.f32.gmra.mrb[0].mxu0 %v1104
        %v1196 = vpop.f32.mrb[0].mxu0
        %v1197 = vadd.f32 %v1088, %v1196
        %v1198 = vpop.f32.mrb[0].mxu0
        %v1199 = vadd.f32 %v1088, %v1198
        %1200 = vdwg.mxu0
        %1201 = vst [vmem:[%s341] sm:$0xff] %v1173
        %1202 = vst [vmem:[%s341 + $0x8] sm:$0xff] %v1175
        %1203 = vst [vmem:[%s341 + $0x10] sm:$0xff] %v1179
        %1204 = vst [vmem:[%s341 + $0x18] sm:$0xff] %v1181
        %1205 = vst [vmem:[%s341 + $0x20] sm:$0xff] %v1185
        %1206 = vst [vmem:[%s341 + $0x28] sm:$0xff] %v1187
        %1207 = vst [vmem:[%s341 + $0x30] sm:$0xff] %v1191
        %1208 = vst [vmem:[%s341 + $0x38] sm:$0xff] %v1193
        %1209 = vst [vmem:[%s341 + $0x40] sm:$0xf] %v1197
        %1210 = vst [vmem:[%s341 + $0x48] sm:$0xf] %v1199
        %s1211 = sand.u32 %s203, 1
        %s1212 = scalar_lea.sflag [#allocation4], %s1211
        %s1213 = sand.u32 %s203, 1
        %s1214 = smul.addr %s1213, 80
        %s1215 = scalar_lea.vmem [#allocation3], %s1214
        // Predicated region
        $region76: #{tpu_custom_call.1} parent=70 // pred_check
          %p1216 = pneg %p213
        $region77: #{tpu_custom_call.1} parent=70 // pred_check_branch
          %1218 = sbr.rel (%p1216) target = $region79
        $region78: #{tpu_custom_call.1} parent=70 // pred_region
          %s1219 = smul.u32 2, %s22
          %s1221 = ssub.s32 1280, 1280
          %1222 = vsyncadd %s1212, %s1221
          %s1223 = smul.addr %s1219, 128
          %s1224 = scalar_lea.hbm %s8, %s1223
          %s1225 = sshll.u32 %s1215, 4
          %s1226 = int_to_ptr.vmem [resolvable:$true] %s1225
          %1231 = dma.vmem_to_hbm [thread:$0]  %s1226, 1280, %s1224, %s1212, 256, 512, 16
        $region79: #{tpu_custom_call.1} parent=70 // pred_fallthru
          _
      $region71: #{tpu_custom_call.1} parent=5 // pred_fallthru
        _
      %p1232 = scmp.le.s32.totalorder 2, %s17
      // Predicated region
      $region80: #{tpu_custom_call.1} parent=5 // pred_check
        %p1233 = pneg %p1232
      $region81: #{tpu_custom_call.1} parent=5 // pred_check_branch
        %1235 = sbr.rel (%p1233) target = $region83
      $region82: #{tpu_custom_call.1} parent=5 // pred_region
        %s1236 = ssub.s32 %s17, 2
        // Predicated region
        $region84: #{tpu_custom_call.1} parent=82 // pred_check
          %p1237 = pneg %p219
        $region85: #{tpu_custom_call.1} parent=82 // pred_check_branch
          %1239 = sbr.rel (%p1237) target = $region87
        $region86: #{tpu_custom_call.1} parent=82 // pred_region
          %s1240 = sand.u32 %s204, 1
          %s1241 = scalar_lea.sflag [#allocation4], %s1240
          %s1242 = sand.u32 %s204, 1
          %s1243 = smul.addr %s1242, 80
          %s1244 = scalar_lea.vmem [#allocation3], %s1243
          %1245 = dma.done %s1241, 1280
        $region87: #{tpu_custom_call.1} parent=82 // pred_fallthru
          _
      $region83: #{tpu_custom_call.1} parent=5 // pred_fallthru
        _
    $region6: #{tpu_custom_call.1} parent=1 // loop_footer
      %s21 = sadd.s32 1, %s17
    $region7: #{tpu_custom_call.1} parent=1 // loop_footer_branch
      %16 = sbr.rel target = $region3
    $region8: #{tpu_custom_call.1} parent=1 // loop_exit
      _
    %1246 = vsyncpa [#allocation4], 1
    %s1247 = scalar_lea.sflag [#allocation4], 1
    %1248 = vsyncpa %s1247, 1

</llo_original>
